<compile_context>
chip_gen: v7x
topology: tpu7x:2x2x1
jax: 0.10.0
libtpu: 0.0.40
codegen_flags: <defaults>
</compile_context>

<pallas_src>
import functools

import jax
import jax.numpy as jnp
from jax import lax
from jax.experimental import pallas as pl
from jax.experimental.pallas import tpu as pltpu

KERNEL_SIZE = 3
DILATION_RATE = 2
NUM_BLOCKS = 4
BN_EPS = 1e-5


# ----------------------------- Pallas kernel ------------------------------- #

def _cife_kernel(x_ref, bn0_ref, w0_ref, b0_ref, wres_ref, bres_ref, o_ref, *,
                 t_len):
    M = x_ref.shape[0]                                    # M = Nb * t_len

    # init BatchNorm1d (eval mode), folded to per-feature scale/shift.
    bn0 = bn0_ref[...]
    h = x_ref[...] * bn0[0:1, :] + bn0[1:2, :]            # (M, F) f32

    # Local time index of each row inside its item, plus hoisted boundary
    # masks (one pair per distinct dilation; d=1 is reused by two layers).
    tloc = lax.broadcasted_iota(jnp.int32, (M, 1), 0) % t_len
    dilations = tuple(DILATION_RATE ** i for i in range(NUM_BLOCKS))
    uniq_d = sorted(set((1,) + dilations))
    mask_lo = {d: tloc >= d for d in uniq_d}              # valid for x[t-d]
    mask_hi = {d: tloc < t_len - d for d in uniq_d}       # valid for x[t+d]

    def conv_bn_relu(h, wpack, shift, d):
        # h: (M, Cin) f32;  wpack: (3*Cin, Cout) bf16, taps packed along the
        # contraction dim with the BN scale pre-folded;  shift: (1, Cout) f32.
        # Tap realignment = XLU roll + boundary mask (wrapped rows are exactly
        # the masked ones; M - d == -d cyclically, keeping the shift >= 0).
        left = jnp.where(mask_lo[d], pltpu.roll(h, d, 0), 0.0)       # x[t-d]
        right = jnp.where(mask_hi[d], pltpu.roll(h, M - d, 0), 0.0)  # x[t+d]
        slab = jnp.concatenate([left, h, right], axis=-1)            # (M,3Cin)
        z = jnp.dot(slab.astype(jnp.bfloat16), wpack,
                    preferred_element_type=jnp.float32)              # (M,Cout)
        return jnp.maximum(z + shift, 0.0)

    # init ConvBlock: Conv1d(F->feat, k=3, p=1) + BN + ReLU
    y = conv_bn_relu(h, w0_ref[...], b0_ref[...], 1)

    # Residual dilated conv blocks (weights indexed per block -> short
    # live ranges).
    for i in range(NUM_BLOCKS):
        y = y + conv_bn_relu(y, wres_ref[i], bres_ref[i], dilations[i])

    # Single contiguous, lane-dense slab store (feat on lanes).
    o_ref[...] = y.astype(o_ref.dtype)


def _choose_items_per_step(n_items, t_len, target_rows=256, min_steps=4):
    """Items batched per grid step: keep M = nb*T sublane-aligned (mult of 8),
    near `target_rows` matmul rows, while leaving several grid steps so each
    TensorCore gets multiple pipelined iterations."""
    cands = [nb for nb in range(1, n_items + 1)
             if n_items % nb == 0 and (nb * t_len) % 8 == 0]
    if not cands:
        return n_items                       # single full block (always legal)
    good = [nb for nb in cands
            if nb * t_len <= target_rows
            and n_items // nb >= min(min_steps, n_items)]
    return max(good) if good else min(cands)


def channel_invariant_feature_extractor(x, kparams):
    """x: (B, C, F, T) float32 -> (B, C, feat, T)."""
    B, C, F, T = x.shape
    N = B * C
    feat = kparams["b0"].shape[-1]

    # Time-major 2-D slab for the kernel, built once by XLA in the wrapper so
    # the kernel needs no in-kernel gather/transpose at all.
    xn = jnp.transpose(x.reshape(N, F, T), (0, 2, 1)).reshape(N * T, F)

    Nb = _choose_items_per_step(N, T)
    G = N // Nb
    M_tile = Nb * T
    assert G * M_tile == N * T

    out = pl.pallas_call(
        functools.partial(_cife_kernel, t_len=T),
        out_shape=jax.ShapeDtypeStruct((N * T, feat), x.dtype),
        grid_spec=pltpu.PrefetchScalarGridSpec(
            num_scalar_prefetch=0,
            grid=(G,),
            in_specs=[
                pl.BlockSpec((M_tile, F), lambda g: (g, 0)),
                pl.BlockSpec((2, F), lambda g: (0, 0)),
                pl.BlockSpec((KERNEL_SIZE * F, feat), lambda g: (0, 0)),
                pl.BlockSpec((1, feat), lambda g: (0, 0)),
                pl.BlockSpec((NUM_BLOCKS, KERNEL_SIZE * feat, feat),
                             lambda g: (0, 0, 0)),
                pl.BlockSpec((NUM_BLOCKS, 1, feat), lambda g: (0, 0, 0)),
            ],
            out_specs=pl.BlockSpec((M_tile, feat), lambda g: (g, 0)),
        ),
        compiler_params=pltpu.CompilerParams(
            dimension_semantics=("parallel",),
            # raises v5e's 16 MiB default; matches v6e/v7x scoped default.
            vmem_limit_bytes=32 * 1024 * 1024),
    )(xn, kparams["bn0"], kparams["w0"], kparams["b0"],
      kparams["wres"], kparams["bres"])

    # Back to the module's (B, C, feat, T) layout (single XLA axis swap).
    return jnp.transpose(out.reshape(N, T, feat), (0, 2, 1)).reshape(
        B, C, feat, T)


# --------------------- deterministic parameter creation --------------------- #

def _bn_raw(key, n):
    k = jax.random.split(key, 4)
    gamma = 1.0 + 0.1 * jax.random.normal(k[0], (n,), jnp.float32)
    beta = 0.1 * jax.random.normal(k[1], (n,), jnp.float32)
    mean = 0.05 * jax.random.normal(k[2], (n,), jnp.float32)
    var = 1.0 + 0.2 * jax.random.uniform(k[3], (n,), jnp.float32)
    return gamma, beta, mean, var


def make_raw_params(key, init_feature, feature):
    keys = jax.random.split(key, 3 + NUM_BLOCKS)
    raw = {}
    raw["bn0"] = _bn_raw(keys[0], init_feature)

    k = jax.random.split(keys[1], 3)
    raw["conv0_w"] = 0.1 * jax.random.normal(
        k[0], (feature, init_feature, KERNEL_SIZE), jnp.float32)  # (Cout,Cin,K)
    raw["conv0_b"] = 0.05 * jax.random.normal(k[1], (feature,), jnp.float32)
    raw["conv0_bn"] = _bn_raw(k[2], feature)

    raw["res"] = []
    for i in range(NUM_BLOCKS):
        k = jax.random.split(keys[2 + i], 3)
        w = 0.1 * jax.random.normal(
            k[0], (feature, feature, KERNEL_SIZE), jnp.float32)
        b = 0.05 * jax.random.normal(k[1], (feature,), jnp.float32)
        raw["res"].append((w, b, _bn_raw(k[2], feature)))
    return raw


def fold_params(raw):
    """Fold conv bias + BN into a per-channel shift, fold the BN scale into
    the conv weights, and pack the 3 taps along the CONTRACTION dim so each
    conv is one (M,3*Cin)x(3*Cin,Cout) MXU matmul; weights stored as bf16."""
    g, b, m, v = raw["bn0"]
    s = g / jnp.sqrt(v + BN_EPS)
    bn0 = jnp.stack([s, b - m * s], 0)                      # (2, F) f32

    def fold_conv(w, bias, bn):
        # w: (Cout, Cin, K) PyTorch conv1d layout.
        gg, beta, mm, vv = bn
        sc = gg / jnp.sqrt(vv + BN_EPS)
        shift = (bias - mm) * sc + beta                     # (Cout,)
        # BN scale folded into the weight, then (Cout,Cin,K) -> (K,Cin,Cout)
        # -> (K*Cin, Cout): tap k occupies contraction rows [k*Cin:(k+1)*Cin].
        wpack = jnp.transpose(w * sc[:, None, None], (2, 1, 0)).reshape(
            -1, w.shape[0])
        return wpack.astype(jnp.bfloat16), shift[None, :].astype(jnp.float32)

    w0, b0 = fold_conv(raw["conv0_w"], raw["conv0_b"], raw["conv0_bn"])
    wres, bres = [], []
    for (w, bias, bn) in raw["res"]:
        wk, bk = fold_conv(w, bias, bn)
        wres.append(wk)
        bres.append(bk)
    return {"bn0": bn0, "w0": w0, "b0": b0,
            "wres": jnp.stack(wres, 0), "bres": jnp.stack(bres, 0)}


# --------------------------- pure-JAX reference ----------------------------- #

def reference_forward(x, raw):
    B, C, F, T = x.shape
    h = x.reshape(B * C, F, T).astype(jnp.float32)

    g, b, m, v = raw["bn0"]
    h = (h - m[None, :, None]) / jnp.sqrt(v[None, :, None] + BN_EPS)
    h = h * g[None, :, None] + b[None, :, None]

    def conv_bn_relu(h, w, bias, bn, dilation, padding):
        y = lax.conv_general_dilated(
            h, w, window_strides=(1,), padding=[(padding, padding)],
            rhs_dilation=(dilation,),
            dimension_numbers=("NCH", "OIH", "NCH"),
            precision=lax.Precision.HIGHEST)
        y = y + bias[None, :, None]
        g, beta, m, v = bn
        y = (y - m[None, :, None]) / jnp.sqrt(v[None, :, None] + BN_EPS)
        y = y * g[None, :, None] + beta[None, :, None]
        return jnp.maximum(y, 0.0)

    h = conv_bn_relu(h, raw["conv0_w"], raw["conv0_b"], raw["conv0_bn"], 1, 1)
    for i, (w, bias, bn) in enumerate(raw["res"]):
        d = DILATION_RATE ** i
        h = h + conv_bn_relu(h, w, bias, bn, d, d)

    feat = h.shape[1]
    return h.reshape(B, C, feat, T)


# ----------------------------------- main ----------------------------------- #

if __name__ == "__main__":
    B, C, F, T = 2, 4, 16, 16      # batch, mics, init_feature, time
    FEATURE = 32

    key = jax.random.PRNGKey(0)
    kx, kp = jax.random.split(key)
    x = jax.random.normal(kx, (B, C, F, T), jnp.float32)

    raw = make_raw_params(kp, F, FEATURE)
    kparams = fold_params(raw)

    out = jax.jit(channel_invariant_feature_extractor)(x, kparams)
    out = jax.block_until_ready(out)

    ref = reference_forward(x, raw)
    assert out.shape == (B, C, FEATURE, T), out.shape
    # bf16 MXU inputs vs f32 HIGHEST-precision reference over 5 stacked conv
    # layers -> loose tolerance (documented per review).
    max_err = float(jnp.max(jnp.abs(out - ref)))
    if max_err > 5e-2:
        raise AssertionError(f"mismatch vs reference, max_err={max_err}")

    print("KERNEL_OK")
</pallas_src>

<mosaic_0001>
module attributes {stable_mosaic.version = 11 : i64} {
  func.func @_cife_kernel(%arg0: i32, %arg1: memref<32x16xf32, #tpu.memory_space<vmem>>, %arg2: memref<2x16xf32, #tpu.memory_space<vmem>>, %arg3: memref<48x32xbf16, #tpu.memory_space<vmem>>, %arg4: memref<1x32xf32, #tpu.memory_space<vmem>>, %arg5: memref<4x96x32xbf16, #tpu.memory_space<vmem>>, %arg6: memref<4x1x32xf32, #tpu.memory_space<vmem>>, %arg7: memref<32x32xf32, #tpu.memory_space<vmem>>) attributes {dimension_semantics = [#tpu.dimension_semantics<parallel>], iteration_bounds = array<i64: 4>, scalar_prefetch = 0 : i64, scratch_operands = 0 : i64, tpu.core_type = #tpu.core_type<tc>, window_params = [{transform_indices = @transform_0, window_bounds = array<i64: 32, 16>}, {pipeline_mode = #tpu.pipeline_mode<synchronous>, transform_indices = @transform_1, window_bounds = array<i64: 2, 16>}, {pipeline_mode = #tpu.pipeline_mode<synchronous>, transform_indices = @transform_2, window_bounds = array<i64: 48, 32>}, {pipeline_mode = #tpu.pipeline_mode<synchronous>, transform_indices = @transform_3, window_bounds = array<i64: 1, 32>}, {pipeline_mode = #tpu.pipeline_mode<synchronous>, transform_indices = @transform_4, window_bounds = array<i64: 4, 96, 32>}, {pipeline_mode = #tpu.pipeline_mode<synchronous>, transform_indices = @transform_5, window_bounds = array<i64: 4, 1, 32>}, {transform_indices = @transform_6, window_bounds = array<i64: 32, 32>}]} {
    %c0 = arith.constant 0 : index
    %c0_0 = arith.constant 0 : index
    %0 = vector.load %arg2[%c0, %c0_0] : memref<2x16xf32, #tpu.memory_space<vmem>>, vector<2x16xf32>
    %c0_1 = arith.constant 0 : index
    %c0_2 = arith.constant 0 : index
    %1 = vector.load %arg1[%c0_1, %c0_2] : memref<32x16xf32, #tpu.memory_space<vmem>>, vector<32x16xf32>
    %2 = vector.extract_strided_slice %0 {offsets = [0, 0], sizes = [1, 16], strides = [1, 1]} : vector<2x16xf32> to vector<1x16xf32>
    %3 = vector.broadcast %2 : vector<1x16xf32> to vector<32x16xf32>
    %4 = arith.mulf %1, %3 : vector<32x16xf32>
    %5 = vector.extract_strided_slice %0 {offsets = [1, 0], sizes = [1, 16], strides = [1, 1]} : vector<2x16xf32> to vector<1x16xf32>
    %6 = vector.broadcast %5 : vector<1x16xf32> to vector<32x16xf32>
    %7 = arith.addf %4, %6 : vector<32x16xf32>
    %8 = tpu.iota {dimensions = array<i32: 0>} : vector<32x1xi32>
    %c16_i32 = arith.constant 16 : i32
    %c0_i32 = arith.constant 0 : i32
    %9 = arith.cmpi eq, %c16_i32, %c0_i32 : i32
    %c1_i32 = arith.constant 1 : i32
    %10 = arith.select %9, %c1_i32, %c16_i32 : i32
    %11 = vector.broadcast %10 : i32 to vector<32x1xi32>
    %12 = arith.remsi %8, %11 : vector<32x1xi32>
    %c0_i32_3 = arith.constant 0 : i32
    %13 = vector.broadcast %c0_i32_3 : i32 to vector<32x1xi32>
    %14 = arith.cmpi ne, %12, %13 : vector<32x1xi32>
    %c0_i32_4 = arith.constant 0 : i32
    %15 = vector.broadcast %c0_i32_4 : i32 to vector<32x1xi32>
    %16 = arith.cmpi slt, %12, %15 : vector<32x1xi32>
    %c0_i32_5 = arith.constant 0 : i32
    %17 = arith.cmpi slt, %10, %c0_i32_5 : i32
    %18 = vector.broadcast %17 : i1 to vector<32x1xi1>
    %19 = vector.broadcast %18 : vector<32x1xi1> to vector<32x1xi1>
    %20 = arith.xori %16, %19 : vector<32x1xi1>
    %21 = arith.andi %20, %14 : vector<32x1xi1>
    %22 = vector.broadcast %10 : i32 to vector<32x1xi32>
    %23 = arith.addi %12, %22 : vector<32x1xi32>
    %24 = arith.select %21, %23, %12 : vector<32x1xi1>, vector<32x1xi32>
    %c1_i32_6 = arith.constant 1 : i32
    %25 = vector.broadcast %c1_i32_6 : i32 to vector<32x1xi32>
    %26 = arith.cmpi sge, %24, %25 : vector<32x1xi32>
    %c2_i32 = arith.constant 2 : i32
    %27 = vector.broadcast %c2_i32 : i32 to vector<32x1xi32>
    %28 = arith.cmpi sge, %24, %27 : vector<32x1xi32>
    %c4_i32 = arith.constant 4 : i32
    %29 = vector.broadcast %c4_i32 : i32 to vector<32x1xi32>
    %30 = arith.cmpi sge, %24, %29 : vector<32x1xi32>
    %c8_i32 = arith.constant 8 : i32
    %31 = vector.broadcast %c8_i32 : i32 to vector<32x1xi32>
    %32 = arith.cmpi sge, %24, %31 : vector<32x1xi32>
    %c15_i32 = arith.constant 15 : i32
    %33 = vector.broadcast %c15_i32 : i32 to vector<32x1xi32>
    %34 = arith.cmpi slt, %24, %33 : vector<32x1xi32>
    %c14_i32 = arith.constant 14 : i32
    %35 = vector.broadcast %c14_i32 : i32 to vector<32x1xi32>
    %36 = arith.cmpi slt, %24, %35 : vector<32x1xi32>
    %c12_i32 = arith.constant 12 : i32
    %37 = vector.broadcast %c12_i32 : i32 to vector<32x1xi32>
    %38 = arith.cmpi slt, %24, %37 : vector<32x1xi32>
    %c8_i32_7 = arith.constant 8 : i32
    %39 = vector.broadcast %c8_i32_7 : i32 to vector<32x1xi32>
    %40 = arith.cmpi slt, %24, %39 : vector<32x1xi32>
    %c0_8 = arith.constant 0 : index
    %c0_9 = arith.constant 0 : index
    %41 = vector.load %arg3[%c0_8, %c0_9] : memref<48x32xbf16, #tpu.memory_space<vmem>>, vector<48x32xbf16>
    %c0_10 = arith.constant 0 : index
    %c0_11 = arith.constant 0 : index
    %42 = vector.load %arg4[%c0_10, %c0_11] : memref<1x32xf32, #tpu.memory_space<vmem>>, vector<1x32xf32>
    %c1_i32_12 = arith.constant 1 : i32
    %43 = tpu.dynamic_rotate %7 by %c1_i32_12 dim 0 : vector<32x16xf32>, i32 -> vector<32x16xf32>
    %cst = arith.constant 0.000000e+00 : f32
    %44 = vector.shape_cast %26 : vector<32x1xi1> to vector<32x1xi1>
    %45 = vector.broadcast %44 : vector<32x1xi1> to vector<32x16xi1>
    %46 = vector.broadcast %cst : f32 to vector<32x16xf32>
    %47 = arith.select %45, %43, %46 : vector<32x16xi1>, vector<32x16xf32>
    %c31_i32 = arith.constant 31 : i32
    %48 = tpu.dynamic_rotate %7 by %c31_i32 dim 0 : vector<32x16xf32>, i32 -> vector<32x16xf32>
    %cst_13 = arith.constant 0.000000e+00 : f32
    %49 = vector.shape_cast %34 : vector<32x1xi1> to vector<32x1xi1>
    %50 = vector.broadcast %49 : vector<32x1xi1> to vector<32x16xi1>
    %51 = vector.broadcast %cst_13 : f32 to vector<32x16xf32>
    %52 = arith.select %50, %48, %51 : vector<32x16xi1>, vector<32x16xf32>
    %53 = tpu.concatenate %47, %7, %52 in 1 : vector<32x16xf32>, vector<32x16xf32>, vector<32x16xf32> -> vector<32x48xf32>
    %54 = arith.truncf %53 : vector<32x48xf32> to vector<32x48xbf16>
    %cst_14 = arith.constant dense<0.000000e+00> : vector<32x32xf32>
    %55 = tpu.matmul %54, %41, %cst_14 {dimension_numbers = #tpu.dot_dimension_numbers<[1], [0], [0], [1], [0, 0, 1, 1], [], []>} : vector<32x48xbf16>, vector<48x32xbf16>, vector<32x32xf32> -> vector<32x32xf32>
    %56 = vector.broadcast %42 : vector<1x32xf32> to vector<32x32xf32>
    %57 = arith.addf %55, %56 : vector<32x32xf32>
    %cst_15 = arith.constant 0.000000e+00 : f32
    %58 = vector.broadcast %cst_15 : f32 to vector<32x32xf32>
    %59 = arith.maximumf %57, %58 : vector<32x32xf32>
    %c0_16 = arith.constant 0 : index
    %c0_17 = arith.constant 0 : index
    %c0_18 = arith.constant 0 : index
    %60 = vector.load %arg5[%c0_16, %c0_17, %c0_18] : memref<4x96x32xbf16, #tpu.memory_space<vmem>>, vector<1x96x32xbf16>
    %61 = vector.shape_cast %60 : vector<1x96x32xbf16> to vector<96x32xbf16>
    %c0_19 = arith.constant 0 : index
    %c0_20 = arith.constant 0 : index
    %c0_21 = arith.constant 0 : index
    %62 = vector.load %arg6[%c0_19, %c0_20, %c0_21] : memref<4x1x32xf32, #tpu.memory_space<vmem>>, vector<1x1x32xf32>
    %63 = vector.shape_cast %62 : vector<1x1x32xf32> to vector<1x32xf32>
    %c1_i32_22 = arith.constant 1 : i32
    %64 = tpu.dynamic_rotate %59 by %c1_i32_22 dim 0 : vector<32x32xf32>, i32 -> vector<32x32xf32>
    %cst_23 = arith.constant 0.000000e+00 : f32
    %65 = vector.shape_cast %26 : vector<32x1xi1> to vector<32x1xi1>
    %66 = vector.broadcast %65 : vector<32x1xi1> to vector<32x32xi1>
    %67 = vector.broadcast %cst_23 : f32 to vector<32x32xf32>
    %68 = arith.select %66, %64, %67 : vector<32x32xi1>, vector<32x32xf32>
    %c31_i32_24 = arith.constant 31 : i32
    %69 = tpu.dynamic_rotate %59 by %c31_i32_24 dim 0 : vector<32x32xf32>, i32 -> vector<32x32xf32>
    %cst_25 = arith.constant 0.000000e+00 : f32
    %70 = vector.shape_cast %34 : vector<32x1xi1> to vector<32x1xi1>
    %71 = vector.broadcast %70 : vector<32x1xi1> to vector<32x32xi1>
    %72 = vector.broadcast %cst_25 : f32 to vector<32x32xf32>
    %73 = arith.select %71, %69, %72 : vector<32x32xi1>, vector<32x32xf32>
    %74 = tpu.concatenate %68, %59, %73 in 1 : vector<32x32xf32>, vector<32x32xf32>, vector<32x32xf32> -> vector<32x96xf32>
    %75 = arith.truncf %74 : vector<32x96xf32> to vector<32x96xbf16>
    %cst_26 = arith.constant dense<0.000000e+00> : vector<32x32xf32>
    %76 = tpu.matmul %75, %61, %cst_26 {dimension_numbers = #tpu.dot_dimension_numbers<[1], [0], [0], [1], [0, 0, 1, 1], [], []>} : vector<32x96xbf16>, vector<96x32xbf16>, vector<32x32xf32> -> vector<32x32xf32>
    %77 = vector.broadcast %63 : vector<1x32xf32> to vector<32x32xf32>
    %78 = arith.addf %76, %77 : vector<32x32xf32>
    %cst_27 = arith.constant 0.000000e+00 : f32
    %79 = vector.broadcast %cst_27 : f32 to vector<32x32xf32>
    %80 = arith.maximumf %78, %79 : vector<32x32xf32>
    %81 = arith.addf %59, %80 : vector<32x32xf32>
    %c1 = arith.constant 1 : index
    %c0_28 = arith.constant 0 : index
    %c0_29 = arith.constant 0 : index
    %82 = vector.load %arg5[%c1, %c0_28, %c0_29] : memref<4x96x32xbf16, #tpu.memory_space<vmem>>, vector<1x96x32xbf16>
    %83 = vector.shape_cast %82 : vector<1x96x32xbf16> to vector<96x32xbf16>
    %c1_30 = arith.constant 1 : index
    %c0_31 = arith.constant 0 : index
    %c0_32 = arith.constant 0 : index
    %84 = vector.load %arg6[%c1_30, %c0_31, %c0_32] : memref<4x1x32xf32, #tpu.memory_space<vmem>>, vector<1x1x32xf32>
    %85 = vector.shape_cast %84 : vector<1x1x32xf32> to vector<1x32xf32>
    %c2_i32_33 = arith.constant 2 : i32
    %86 = tpu.dynamic_rotate %81 by %c2_i32_33 dim 0 : vector<32x32xf32>, i32 -> vector<32x32xf32>
    %cst_34 = arith.constant 0.000000e+00 : f32
    %87 = vector.shape_cast %28 : vector<32x1xi1> to vector<32x1xi1>
    %88 = vector.broadcast %87 : vector<32x1xi1> to vector<32x32xi1>
    %89 = vector.broadcast %cst_34 : f32 to vector<32x32xf32>
    %90 = arith.select %88, %86, %89 : vector<32x32xi1>, vector<32x32xf32>
    %c30_i32 = arith.constant 30 : i32
    %91 = tpu.dynamic_rotate %81 by %c30_i32 dim 0 : vector<32x32xf32>, i32 -> vector<32x32xf32>
    %cst_35 = arith.constant 0.000000e+00 : f32
    %92 = vector.shape_cast %36 : vector<32x1xi1> to vector<32x1xi1>
    %93 = vector.broadcast %92 : vector<32x1xi1> to vector<32x32xi1>
    %94 = vector.broadcast %cst_35 : f32 to vector<32x32xf32>
    %95 = arith.select %93, %91, %94 : vector<32x32xi1>, vector<32x32xf32>
    %96 = tpu.concatenate %90, %81, %95 in 1 : vector<32x32xf32>, vector<32x32xf32>, vector<32x32xf32> -> vector<32x96xf32>
    %97 = arith.truncf %96 : vector<32x96xf32> to vector<32x96xbf16>
    %cst_36 = arith.constant dense<0.000000e+00> : vector<32x32xf32>
    %98 = tpu.matmul %97, %83, %cst_36 {dimension_numbers = #tpu.dot_dimension_numbers<[1], [0], [0], [1], [0, 0, 1, 1], [], []>} : vector<32x96xbf16>, vector<96x32xbf16>, vector<32x32xf32> -> vector<32x32xf32>
    %99 = vector.broadcast %85 : vector<1x32xf32> to vector<32x32xf32>
    %100 = arith.addf %98, %99 : vector<32x32xf32>
    %cst_37 = arith.constant 0.000000e+00 : f32
    %101 = vector.broadcast %cst_37 : f32 to vector<32x32xf32>
    %102 = arith.maximumf %100, %101 : vector<32x32xf32>
    %103 = arith.addf %81, %102 : vector<32x32xf32>
    %c2 = arith.constant 2 : index
    %c0_38 = arith.constant 0 : index
    %c0_39 = arith.constant 0 : index
    %104 = vector.load %arg5[%c2, %c0_38, %c0_39] : memref<4x96x32xbf16, #tpu.memory_space<vmem>>, vector<1x96x32xbf16>
    %105 = vector.shape_cast %104 : vector<1x96x32xbf16> to vector<96x32xbf16>
    %c2_40 = arith.constant 2 : index
    %c0_41 = arith.constant 0 : index
    %c0_42 = arith.constant 0 : index
    %106 = vector.load %arg6[%c2_40, %c0_41, %c0_42] : memref<4x1x32xf32, #tpu.memory_space<vmem>>, vector<1x1x32xf32>
    %107 = vector.shape_cast %106 : vector<1x1x32xf32> to vector<1x32xf32>
    %c4_i32_43 = arith.constant 4 : i32
    %108 = tpu.dynamic_rotate %103 by %c4_i32_43 dim 0 : vector<32x32xf32>, i32 -> vector<32x32xf32>
    %cst_44 = arith.constant 0.000000e+00 : f32
    %109 = vector.shape_cast %30 : vector<32x1xi1> to vector<32x1xi1>
    %110 = vector.broadcast %109 : vector<32x1xi1> to vector<32x32xi1>
    %111 = vector.broadcast %cst_44 : f32 to vector<32x32xf32>
    %112 = arith.select %110, %108, %111 : vector<32x32xi1>, vector<32x32xf32>
    %c28_i32 = arith.constant 28 : i32
    %113 = tpu.dynamic_rotate %103 by %c28_i32 dim 0 : vector<32x32xf32>, i32 -> vector<32x32xf32>
    %cst_45 = arith.constant 0.000000e+00 : f32
    %114 = vector.shape_cast %38 : vector<32x1xi1> to vector<32x1xi1>
    %115 = vector.broadcast %114 : vector<32x1xi1> to vector<32x32xi1>
    %116 = vector.broadcast %cst_45 : f32 to vector<32x32xf32>
    %117 = arith.select %115, %113, %116 : vector<32x32xi1>, vector<32x32xf32>
    %118 = tpu.concatenate %112, %103, %117 in 1 : vector<32x32xf32>, vector<32x32xf32>, vector<32x32xf32> -> vector<32x96xf32>
    %119 = arith.truncf %118 : vector<32x96xf32> to vector<32x96xbf16>
    %cst_46 = arith.constant dense<0.000000e+00> : vector<32x32xf32>
    %120 = tpu.matmul %119, %105, %cst_46 {dimension_numbers = #tpu.dot_dimension_numbers<[1], [0], [0], [1], [0, 0, 1, 1], [], []>} : vector<32x96xbf16>, vector<96x32xbf16>, vector<32x32xf32> -> vector<32x32xf32>
    %121 = vector.broadcast %107 : vector<1x32xf32> to vector<32x32xf32>
    %122 = arith.addf %120, %121 : vector<32x32xf32>
    %cst_47 = arith.constant 0.000000e+00 : f32
    %123 = vector.broadcast %cst_47 : f32 to vector<32x32xf32>
    %124 = arith.maximumf %122, %123 : vector<32x32xf32>
    %125 = arith.addf %103, %124 : vector<32x32xf32>
    %c3 = arith.constant 3 : index
    %c0_48 = arith.constant 0 : index
    %c0_49 = arith.constant 0 : index
    %126 = vector.load %arg5[%c3, %c0_48, %c0_49] : memref<4x96x32xbf16, #tpu.memory_space<vmem>>, vector<1x96x32xbf16>
    %127 = vector.shape_cast %126 : vector<1x96x32xbf16> to vector<96x32xbf16>
    %c3_50 = arith.constant 3 : index
    %c0_51 = arith.constant 0 : index
    %c0_52 = arith.constant 0 : index
    %128 = vector.load %arg6[%c3_50, %c0_51, %c0_52] : memref<4x1x32xf32, #tpu.memory_space<vmem>>, vector<1x1x32xf32>
    %129 = vector.shape_cast %128 : vector<1x1x32xf32> to vector<1x32xf32>
    %c8_i32_53 = arith.constant 8 : i32
    %130 = tpu.dynamic_rotate %125 by %c8_i32_53 dim 0 : vector<32x32xf32>, i32 -> vector<32x32xf32>
    %cst_54 = arith.constant 0.000000e+00 : f32
    %131 = vector.shape_cast %32 : vector<32x1xi1> to vector<32x1xi1>
    %132 = vector.broadcast %131 : vector<32x1xi1> to vector<32x32xi1>
    %133 = vector.broadcast %cst_54 : f32 to vector<32x32xf32>
    %134 = arith.select %132, %130, %133 : vector<32x32xi1>, vector<32x32xf32>
    %c24_i32 = arith.constant 24 : i32
    %135 = tpu.dynamic_rotate %125 by %c24_i32 dim 0 : vector<32x32xf32>, i32 -> vector<32x32xf32>
    %cst_55 = arith.constant 0.000000e+00 : f32
    %136 = vector.shape_cast %40 : vector<32x1xi1> to vector<32x1xi1>
    %137 = vector.broadcast %136 : vector<32x1xi1> to vector<32x32xi1>
    %138 = vector.broadcast %cst_55 : f32 to vector<32x32xf32>
    %139 = arith.select %137, %135, %138 : vector<32x32xi1>, vector<32x32xf32>
    %140 = tpu.concatenate %134, %125, %139 in 1 : vector<32x32xf32>, vector<32x32xf32>, vector<32x32xf32> -> vector<32x96xf32>
    %141 = arith.truncf %140 : vector<32x96xf32> to vector<32x96xbf16>
    %cst_56 = arith.constant dense<0.000000e+00> : vector<32x32xf32>
    %142 = tpu.matmul %141, %127, %cst_56 {dimension_numbers = #tpu.dot_dimension_numbers<[1], [0], [0], [1], [0, 0, 1, 1], [], []>} : vector<32x96xbf16>, vector<96x32xbf16>, vector<32x32xf32> -> vector<32x32xf32>
    %143 = vector.broadcast %129 : vector<1x32xf32> to vector<32x32xf32>
    %144 = arith.addf %142, %143 : vector<32x32xf32>
    %cst_57 = arith.constant 0.000000e+00 : f32
    %145 = vector.broadcast %cst_57 : f32 to vector<32x32xf32>
    %146 = arith.maximumf %144, %145 : vector<32x32xf32>
    %147 = arith.addf %125, %146 : vector<32x32xf32>
    %c0_58 = arith.constant 0 : index
    %c0_59 = arith.constant 0 : index
    %148 = vector.load %arg7[%c0_58, %c0_59] : memref<32x32xf32, #tpu.memory_space<vmem>>, vector<32x32xf32>
    tpu.vector_store %arg7[%c0_58, %c0_59], %147 {strides = array<i32>} : memref<32x32xf32, #tpu.memory_space<vmem>>, vector<32x32xf32>,
    return
  }
  func.func @transform_0(%arg0: i32) -> (i32, i32) {
    %c0_i32 = arith.constant 0 : i32
    %c0_i32_0 = arith.constant 0 : i32
    return %arg0, %c0_i32 : i32, i32
  }
  func.func @transform_1(%arg0: i32) -> (i32, i32) {
    %c0_i32 = arith.constant 0 : i32
    %c0_i32_0 = arith.constant 0 : i32
    %c0_i32_1 = arith.constant 0 : i32
    return %c0_i32, %c0_i32_0 : i32, i32
  }
  func.func @transform_2(%arg0: i32) -> (i32, i32) {
    %c0_i32 = arith.constant 0 : i32
    %c0_i32_0 = arith.constant 0 : i32
    %c0_i32_1 = arith.constant 0 : i32
    return %c0_i32, %c0_i32_0 : i32, i32
  }
  func.func @transform_3(%arg0: i32) -> (i32, i32) {
    %c0_i32 = arith.constant 0 : i32
    %c0_i32_0 = arith.constant 0 : i32
    %c0_i32_1 = arith.constant 0 : i32
    return %c0_i32, %c0_i32_0 : i32, i32
  }
  func.func @transform_4(%arg0: i32) -> (i32, i32, i32) {
    %c0_i32 = arith.constant 0 : i32
    %c0_i32_0 = arith.constant 0 : i32
    %c0_i32_1 = arith.constant 0 : i32
    %c0_i32_2 = arith.constant 0 : i32
    return %c0_i32, %c0_i32_0, %c0_i32_1 : i32, i32, i32
  }
  func.func @transform_5(%arg0: i32) -> (i32, i32, i32) {
    %c0_i32 = arith.constant 0 : i32
    %c0_i32_0 = arith.constant 0 : i32
    %c0_i32_1 = arith.constant 0 : i32
    %c0_i32_2 = arith.constant 0 : i32
    return %c0_i32, %c0_i32_0, %c0_i32_1 : i32, i32, i32
  }
  func.func @transform_6(%arg0: i32) -> (i32, i32) {
    %c0_i32 = arith.constant 0 : i32
    %c0_i32_0 = arith.constant 0 : i32
    return %arg0, %c0_i32 : i32, i32
  }
}

</mosaic_0001>

<llo_original>
// kernel: channel_invariant_feature_extractor.1
$region0: #{channel_invariant_feature_extractor.1}
  #allocation0 [shape = 'u32[]', space=smem, size = 0x4, offset = 0x4, fixed_abs, tag = 'smem constant byte address 0x4 - core index']
  #allocation1 [shape = 'u32[144,128]{1,0:T(1,128)}', space=vmem, size = 0x12000, scoped, tag = 'internal scratch']
  %s0 = inlined_call_operand.vmem [shape: f32[128,16], index: 0, kind: input, shape index: {}]
  %s1 = inlined_call_operand.vmem [shape: f32[2,16], index: 1, kind: input, shape index: {}]
  %s2 = inlined_call_operand.vmem [shape: bf16[48,32], index: 2, kind: input, shape index: {}]
  %s3 = inlined_call_operand.vmem [shape: f32[1,32], index: 3, kind: input, shape index: {}]
  %s4 = inlined_call_operand.vmem [shape: bf16[4,96,32], index: 4, kind: input, shape index: {}]
  %s5 = inlined_call_operand.vmem [shape: f32[4,1,32], index: 5, kind: input, shape index: {}]
  %s6 = inlined_call_operand.hbm [shape: f32[128,32], index: 6, kind: output, shape index: {}]
  %s7 = sld [smem:[#allocation0]]
  $region57: #{channel_invariant_feature_extractor.1} parent=0
    _
  %s9 = ssub.s32 1, %s7
  %s10 = scalar_select 0, %s9, %s7
  $region1: #{channel_invariant_feature_extractor.1} parent=0
    #allocation2 [shape = 'u8[32768]{0}', space=vmem, size = 0x8000, scoped, tag = 'output window, operand 0']
    #allocation3 [shape = 's32[2]{0}', space=sflag, size = 0x8, scoped, tag = 'scoped memory for channel_invariant_feature_extractor.1']
    %11 = vsyncpa [#allocation3], 0
    %s12 = scalar_lea.sflag [#allocation3], 1
    %13 = vsyncpa %s12, 0
    loop: start=0, step=1, limit=6
    $region2: #{channel_invariant_feature_extractor.1} parent=1 // loop_pre_header
      _
    $region3: #{channel_invariant_feature_extractor.1} parent=1 // loop_header
      %s15 = sphi 0, %s19
      %p16 = scmp.ge.s32.totalorder %s15, 6
      %s25 = sphi 0, %s27
      %s28 = sphi 0, %s25
      %s29 = sphi 0, %s28
      %s45 = sphi 0, %s29
      %s49 = sphi 0, %s49
      %s51 = sphi 0, %s49
      %s52 = sphi 0, %s51
      %s66 = sphi 0, %s52
      %s70 = sphi 0, %s70
      %s72 = sphi 0, %s70
      %s73 = sphi 0, %s72
      %s87 = sphi 0, %s73
      %s91 = sphi 0, %s91
      %s93 = sphi 0, %s91
      %s94 = sphi 0, %s93
      %s108 = sphi 0, %s94
      %s112 = sphi 0, %s112
      %s114 = sphi 0, %s112
      %s115 = sphi 0, %s114
      %s129 = sphi 0, %s115
      %s133 = sphi 0, %s133
      %s135 = sphi 0, %s133
      %s136 = sphi 0, %s135
      %s150 = sphi 0, %s136
      %s156 = sphi 0, %s158
      %s159 = sphi 0, %s156
      %s160 = sphi 0, %s159
      %s176 = sphi 0, %s160
    $region4: #{channel_invariant_feature_extractor.1} parent=1 // loop_header_branch
      %18 = sbr.rel (%p16) target = $region8
    $region5: #{channel_invariant_feature_extractor.1} parent=1 // loop_body
      %s20 = ssub.s32 %s15, 1
      %s21 = ssub.s32 %s15, 2
      %s22 = sadd.s32 %s15, 1
      %s23 = ssub.s32 %s15, %s22
      %p24 = scmp.eq.s32.totalorder %s23, 0
      %s26 = sadd.s32 %s25, 1
      %s27 = scalar_select %p24, %s25, %s26
      %p30 = pneg %p24
      %p31 = scmp.eq.s32.totalorder %s15, 3
      %p32 = por %p30, %p31
      %p33 = scmp.ne.s32.totalorder %s25, %s28
      %p34 = scmp.eq.s32.totalorder %s15, 0
      %p35 = por %p33, %p34
      %p36 = scmp.ne.s32.totalorder %s25, %s28
      %p37 = scmp.eq.s32.totalorder %s20, 3
      %p38 = por %p36, %p37
      %p39 = scmp.ne.s32.totalorder %s28, %s29
      %p40 = scmp.eq.s32.totalorder %s20, 0
      %p41 = por %p39, %p40
      %p42 = scmp.ne.s32.totalorder %s28, %s29
      %p43 = scmp.eq.s32.totalorder %s21, 3
      %p44 = por %p42, %p43
      %p46 = scmp.ne.s32.totalorder %s29, %s45
      %p47 = scmp.eq.s32.totalorder %s21, 0
      %p48 = por %p46, %p47
      %s50 = sadd.s32 %s49, 1
      %p53 = scmp.eq.s32.totalorder %s15, 3
      %p54 = scmp.ne.s32.totalorder %s49, %s51
      %p55 = scmp.eq.s32.totalorder %s15, 0
      %p56 = por %p54, %p55
      %p57 = scmp.ne.s32.totalorder %s49, %s51
      %p58 = scmp.eq.s32.totalorder %s20, 3
      %p59 = por %p57, %p58
      %p60 = scmp.ne.s32.totalorder %s51, %s52
      %p61 = scmp.eq.s32.totalorder %s20, 0
      %p62 = por %p60, %p61
      %p63 = scmp.ne.s32.totalorder %s51, %s52
      %p64 = scmp.eq.s32.totalorder %s21, 3
      %p65 = por %p63, %p64
      %p67 = scmp.ne.s32.totalorder %s52, %s66
      %p68 = scmp.eq.s32.totalorder %s21, 0
      %p69 = por %p67, %p68
      %s71 = sadd.s32 %s70, 1
      %p74 = scmp.eq.s32.totalorder %s15, 3
      %p75 = scmp.ne.s32.totalorder %s70, %s72
      %p76 = scmp.eq.s32.totalorder %s15, 0
      %p77 = por %p75, %p76
      %p78 = scmp.ne.s32.totalorder %s70, %s72
      %p79 = scmp.eq.s32.totalorder %s20, 3
      %p80 = por %p78, %p79
      %p81 = scmp.ne.s32.totalorder %s72, %s73
      %p82 = scmp.eq.s32.totalorder %s20, 0
      %p83 = por %p81, %p82
      %p84 = scmp.ne.s32.totalorder %s72, %s73
      %p85 = scmp.eq.s32.totalorder %s21, 3
      %p86 = por %p84, %p85
      %p88 = scmp.ne.s32.totalorder %s73, %s87
      %p89 = scmp.eq.s32.totalorder %s21, 0
      %p90 = por %p88, %p89
      %s92 = sadd.s32 %s91, 1
      %p95 = scmp.eq.s32.totalorder %s15, 3
      %p96 = scmp.ne.s32.totalorder %s91, %s93
      %p97 = scmp.eq.s32.totalorder %s15, 0
      %p98 = por %p96, %p97
      %p99 = scmp.ne.s32.totalorder %s91, %s93
      %p100 = scmp.eq.s32.totalorder %s20, 3
      %p101 = por %p99, %p100
      %p102 = scmp.ne.s32.totalorder %s93, %s94
      %p103 = scmp.eq.s32.totalorder %s20, 0
      %p104 = por %p102, %p103
      %p105 = scmp.ne.s32.totalorder %s93, %s94
      %p106 = scmp.eq.s32.totalorder %s21, 3
      %p107 = por %p105, %p106
      %p109 = scmp.ne.s32.totalorder %s94, %s108
      %p110 = scmp.eq.s32.totalorder %s21, 0
      %p111 = por %p109, %p110
      %s113 = sadd.s32 %s112, 1
      %p116 = scmp.eq.s32.totalorder %s15, 3
      %p117 = scmp.ne.s32.totalorder %s112, %s114
      %p118 = scmp.eq.s32.totalorder %s15, 0
      %p119 = por %p117, %p118
      %p120 = scmp.ne.s32.totalorder %s112, %s114
      %p121 = scmp.eq.s32.totalorder %s20, 3
      %p122 = por %p120, %p121
      %p123 = scmp.ne.s32.totalorder %s114, %s115
      %p124 = scmp.eq.s32.totalorder %s20, 0
      %p125 = por %p123, %p124
      %p126 = scmp.ne.s32.totalorder %s114, %s115
      %p127 = scmp.eq.s32.totalorder %s21, 3
      %p128 = por %p126, %p127
      %p130 = scmp.ne.s32.totalorder %s115, %s129
      %p131 = scmp.eq.s32.totalorder %s21, 0
      %p132 = por %p130, %p131
      %s134 = sadd.s32 %s133, 1
      %p137 = scmp.eq.s32.totalorder %s15, 3
      %p138 = scmp.ne.s32.totalorder %s133, %s135
      %p139 = scmp.eq.s32.totalorder %s15, 0
      %p140 = por %p138, %p139
      %p141 = scmp.ne.s32.totalorder %s133, %s135
      %p142 = scmp.eq.s32.totalorder %s20, 3
      %p143 = por %p141, %p142
      %p144 = scmp.ne.s32.totalorder %s135, %s136
      %p145 = scmp.eq.s32.totalorder %s20, 0
      %p146 = por %p144, %p145
      %p147 = scmp.ne.s32.totalorder %s135, %s136
      %p148 = scmp.eq.s32.totalorder %s21, 3
      %p149 = por %p147, %p148
      %p151 = scmp.ne.s32.totalorder %s136, %s150
      %p152 = scmp.eq.s32.totalorder %s21, 0
      %p153 = por %p151, %p152
      %s154 = ssub.s32 %s15, %s22
      %p155 = scmp.eq.s32.totalorder %s154, 0
      %s157 = sadd.s32 %s156, 1
      %s158 = scalar_select %p155, %s156, %s157
      %p161 = pneg %p155
      %p162 = scmp.eq.s32.totalorder %s15, 3
      %p163 = por %p161, %p162
      %p164 = scmp.ne.s32.totalorder %s156, %s159
      %p165 = scmp.eq.s32.totalorder %s15, 0
      %p166 = por %p164, %p165
      %p167 = scmp.ne.s32.totalorder %s156, %s159
      %p168 = scmp.eq.s32.totalorder %s20, 3
      %p169 = por %p167, %p168
      %p170 = scmp.ne.s32.totalorder %s159, %s160
      %p171 = scmp.eq.s32.totalorder %s20, 0
      %p172 = por %p170, %p171
      %p173 = scmp.ne.s32.totalorder %s159, %s160
      %p174 = scmp.eq.s32.totalorder %s21, 3
      %p175 = por %p173, %p174
      %p177 = scmp.ne.s32.totalorder %s160, %s176
      %p178 = scmp.eq.s32.totalorder %s21, 0
      %p179 = por %p177, %p178
      %p180 = scmp.le.s32.totalorder 1, %s15
      %p181 = scmp.lt.s32.totalorder %s15, 5
      %p182 = pnand %p180, %p181
      %p183 = pneg %p182
      // Predicated region
      $region9: #{channel_invariant_feature_extractor.1} parent=5 // pred_check
        _
      $region10: #{channel_invariant_feature_extractor.1} parent=5 // pred_check_branch
        %185 = sbr.rel (%p182) target = $region12
      $region11: #{channel_invariant_feature_extractor.1} parent=5 // pred_region
        %s186 = ssub.s32 %s15, 1
        // Predicated region
        $region13: #{channel_invariant_feature_extractor.1} parent=11 // pred_check
          %p187 = pneg %p62
        $region14: #{channel_invariant_feature_extractor.1} parent=11 // pred_check_branch
          %189 = sbr.rel (%p187) target = $region16
        $region15: #{channel_invariant_feature_extractor.1} parent=11 // pred_region
          _
        $region16: #{channel_invariant_feature_extractor.1} parent=11 // pred_fallthru
          _
        // Predicated region
        $region17: #{channel_invariant_feature_extractor.1} parent=11 // pred_check
          %p190 = pneg %p83
        $region18: #{channel_invariant_feature_extractor.1} parent=11 // pred_check_branch
          %192 = sbr.rel (%p190) target = $region20
        $region19: #{channel_invariant_feature_extractor.1} parent=11 // pred_region
          _
        $region20: #{channel_invariant_feature_extractor.1} parent=11 // pred_fallthru
          _
        // Predicated region
        $region21: #{channel_invariant_feature_extractor.1} parent=11 // pred_check
          %p193 = pneg %p104
        $region22: #{channel_invariant_feature_extractor.1} parent=11 // pred_check_branch
          %195 = sbr.rel (%p193) target = $region24
        $region23: #{channel_invariant_feature_extractor.1} parent=11 // pred_region
          _
        $region24: #{channel_invariant_feature_extractor.1} parent=11 // pred_fallthru
          _
        // Predicated region
        $region25: #{channel_invariant_feature_extractor.1} parent=11 // pred_check
          %p196 = pneg %p125
        $region26: #{channel_invariant_feature_extractor.1} parent=11 // pred_check_branch
          %198 = sbr.rel (%p196) target = $region28
        $region27: #{channel_invariant_feature_extractor.1} parent=11 // pred_region
          _
        $region28: #{channel_invariant_feature_extractor.1} parent=11 // pred_fallthru
          _
        // Predicated region
        $region29: #{channel_invariant_feature_extractor.1} parent=11 // pred_check
          %p199 = pneg %p146
        $region30: #{channel_invariant_feature_extractor.1} parent=11 // pred_check_branch
          %201 = sbr.rel (%p199) target = $region32
        $region31: #{channel_invariant_feature_extractor.1} parent=11 // pred_region
          _
        $region32: #{channel_invariant_feature_extractor.1} parent=11 // pred_fallthru
          _
      $region12: #{channel_invariant_feature_extractor.1} parent=5 // pred_fallthru
        _
      %p202 = scmp.lt.s32.totalorder %s15, 4
      // Predicated region
      $region33: #{channel_invariant_feature_extractor.1} parent=5 // pred_check
        %p203 = pneg %p202
      $region34: #{channel_invariant_feature_extractor.1} parent=5 // pred_check_branch
        %205 = sbr.rel (%p203) target = $region36
      $region35: #{channel_invariant_feature_extractor.1} parent=5 // pred_region
        // Predicated region
        $region37: #{channel_invariant_feature_extractor.1} parent=35 // pred_check
          %p206 = pneg %p35
        $region38: #{channel_invariant_feature_extractor.1} parent=35 // pred_check_branch
          %208 = sbr.rel (%p206) target = $region40
        $region39: #{channel_invariant_feature_extractor.1} parent=35 // pred_region
          %s209 = smul.u32 4, %s15
          %p210 = scmp.lt.s32.totalorder %s209, 15
          %s211 = scalar_select %p210, %s209, 15
          %s212 = smul.addr %s211, 8
          %s213 = scalar_lea.vmem %s0, %s212
          %s214 = smul.u32 4, %s15
        $region40: #{channel_invariant_feature_extractor.1} parent=35 // pred_fallthru
          _
      $region36: #{channel_invariant_feature_extractor.1} parent=5 // pred_fallthru
        _
      %p215 = scmp.le.s32.totalorder 1, %s15
      %p216 = scmp.lt.s32.totalorder %s15, 5
      %p217 = pnand %p215, %p216
      %p218 = pneg %p217
      // Predicated region
      $region41: #{channel_invariant_feature_extractor.1} parent=5 // pred_check
        _
      $region42: #{channel_invariant_feature_extractor.1} parent=5 // pred_check_branch
        %220 = sbr.rel (%p217) target = $region44
      $region43: #{channel_invariant_feature_extractor.1} parent=5 // pred_region
        %s221 = ssub.s32 %s15, 1
        %s222 = smul.u32 4, %s20
        %p223 = scmp.lt.s32.totalorder %s222, 15
        %s224 = scalar_select %p223, %s222, 15
        %s225 = smul.addr %s224, 8
        %s226 = scalar_lea.vmem %s0, %s225
        %p227 = pneg %p41
        %p228 = pneg %p38
        %p229 = pneg %p62
        %p230 = pneg %p59
        %p231 = pneg %p83
        %p232 = pneg %p80
        %p233 = pneg %p104
        %p234 = pneg %p101
        %p235 = pneg %p125
        %p236 = pneg %p122
        %p237 = pneg %p146
        %p238 = pneg %p143
        %p239 = pneg %p172
        %p240 = pneg %p169
        %s241 = sand.u32 %s159, 1
        %s242 = scalar_lea.sflag [#allocation3], %s241
        %s243 = sand.u32 %s159, 1
        %s244 = smul.addr %s243, 32
        %s245 = scalar_lea.vmem [#allocation2], %s244
        %s246 = smul.u32 4, %s20
        %p247 = scmp.lt.s32.totalorder %s246, 15
        %s248 = scalar_select %p247, %s246, 15
        %s249 = smul.addr %s248, 8
        %s250 = scalar_lea.vmem %s0, %s249
        %s251 = smul.u32 4, %s20
        %s252 = smul.u32 4, %s20
        %v254 = vld [vmem:[%s1] sm:$0x3]
        %v255 = vld [vmem:[%s250] sm:$0xff]
        %v256 = vld [vmem:[%s250 + $0x8] sm:$0xff]
        %v257 = vld [vmem:[%s250 + $0x10] sm:$0xff]
        %v258 = vld [vmem:[%s250 + $0x18] sm:$0xff]
        %v259 = vlaneseq
        %v260 = vshrl.u32 %v259, 7
        %v261 = vsub.s32 0, %v260
        %v262 = vrot.slane %v254, %v261
        %v263 = vmul.f32 %v255, %v262
        %v264 = vmul.f32 %v256, %v262
        %v265 = vmul.f32 %v257, %v262
        %v266 = vmul.f32 %v258, %v262
        %v267 = vlaneseq
        %v268 = vshrl.u32 %v267, 7
        %v269 = vsub.s32 1, %v268
        %v270 = vrot.slane %v254, %v269
        %v271 = vadd.f32 %v263, %v270
        %v272 = vadd.f32 %v264, %v270
        %v273 = vadd.f32 %v265, %v270
        %v274 = vadd.f32 %v266, %v270
        %v275 = vlaneseq
        %v276 = vshrl.u32 %v275, 7
        %v277 = vadd.s32 %v276, 8
        %v278 = vadd.s32 %v276, 16
        %v279 = vadd.s32 %v276, 24
        %vm280 = vcmp.lt.s32.totalorder %v276, 0
        %v281 = vsub.s32 0, %v276
        %v282 = vsel %vm280, %v281, %v276
        %v283 = vshrl.u32 %v282, 4
        %v284 = vand.u32 %v282, 15
        %v285 = vsub.s32 0, %v284
        %v286 = vsel %vm280, %v285, %v284
        %vm287 = vcmp.lt.s32.totalorder %v277, 0
        %v288 = vsub.s32 0, %v277
        %v289 = vsel %vm287, %v288, %v277
        %v290 = vshrl.u32 %v289, 4
        %v291 = vand.u32 %v289, 15
        %v292 = vsub.s32 0, %v291
        %v293 = vsel %vm287, %v292, %v291
        %vm294 = vcmp.lt.s32.totalorder %v278, 0
        %v295 = vsub.s32 0, %v278
        %v296 = vsel %vm294, %v295, %v278
        %v297 = vshrl.u32 %v296, 4
        %v298 = vand.u32 %v296, 15
        %v299 = vsub.s32 0, %v298
        %v300 = vsel %vm294, %v299, %v298
        %vm301 = vcmp.lt.s32.totalorder %v279, 0
        %v302 = vsub.s32 0, %v279
        %v303 = vsel %vm301, %v302, %v279
        %v304 = vshrl.u32 %v303, 4
        %v305 = vand.u32 %v303, 15
        %v306 = vsub.s32 0, %v305
        %v307 = vsel %vm301, %v306, %v305
        %vm308 = vcmp.ne.s32.totalorder %v286, 0
        %vm309 = vcmp.ne.s32.totalorder %v293, 0
        %vm310 = vcmp.ne.s32.totalorder %v300, 0
        %vm311 = vcmp.ne.s32.totalorder %v307, 0
        %vm312 = vcmp.lt.s32.totalorder %v286, 0
        %vm313 = vcmp.lt.s32.totalorder %v293, 0
        %vm314 = vcmp.lt.s32.totalorder %v300, 0
        %vm315 = vcmp.lt.s32.totalorder %v307, 0
        %vm316 = vmand %vm312, %vm308
        %vm317 = vmand %vm313, %vm309
        %vm318 = vmand %vm314, %vm310
        %vm319 = vmand %vm315, %vm311
        %v320 = vadd.s32 %v286, 16
        %v321 = vadd.s32 %v293, 16
        %v322 = vadd.s32 %v300, 16
        %v323 = vadd.s32 %v307, 16
        %v324 = vsel %vm316, %v320, %v286
        %v325 = vsel %vm317, %v321, %v293
        %v326 = vsel %vm318, %v322, %v300
        %v327 = vsel %vm319, %v323, %v307
        %vm328 = vcmp.ge.s32.totalorder %v324, 1
        %vm329 = vcmp.ge.s32.totalorder %v325, 1
        %vm330 = vcmp.ge.s32.totalorder %v326, 1
        %vm331 = vcmp.ge.s32.totalorder %v327, 1
        %vm332 = vcmp.ge.s32.totalorder %v324, 2
        %vm333 = vcmp.ge.s32.totalorder %v325, 2
        %vm334 = vcmp.ge.s32.totalorder %v326, 2
        %vm335 = vcmp.ge.s32.totalorder %v327, 2
        %vm336 = vcmp.ge.s32.totalorder %v324, 4
        %vm337 = vcmp.ge.s32.totalorder %v325, 4
        %vm338 = vcmp.ge.s32.totalorder %v326, 4
        %vm339 = vcmp.ge.s32.totalorder %v327, 4
        %vm340 = vcmp.ge.s32.totalorder %v324, 8
        %vm341 = vcmp.ge.s32.totalorder %v325, 8
        %vm342 = vcmp.ge.s32.totalorder %v326, 8
        %vm343 = vcmp.ge.s32.totalorder %v327, 8
        %vm344 = vcmp.lt.s32.totalorder %v324, 15
        %vm345 = vcmp.lt.s32.totalorder %v325, 15
        %vm346 = vcmp.lt.s32.totalorder %v326, 15
        %vm347 = vcmp.lt.s32.totalorder %v327, 15
        %vm348 = vcmp.lt.s32.totalorder %v324, 14
        %vm349 = vcmp.lt.s32.totalorder %v325, 14
        %vm350 = vcmp.lt.s32.totalorder %v326, 14
        %vm351 = vcmp.lt.s32.totalorder %v327, 14
        %vm352 = vcmp.lt.s32.totalorder %v324, 12
        %vm353 = vcmp.lt.s32.totalorder %v325, 12
        %vm354 = vcmp.lt.s32.totalorder %v326, 12
        %vm355 = vcmp.lt.s32.totalorder %v327, 12
        %vm356 = vcmp.lt.s32.totalorder %v324, 8
        %vm357 = vcmp.lt.s32.totalorder %v325, 8
        %vm358 = vcmp.lt.s32.totalorder %v326, 8
        %vm359 = vcmp.lt.s32.totalorder %v327, 8
        %v360 = vld [vmem:[%s2] sm:$0xf]
        %v361 = vld [vmem:[%s2 + $0x4] sm:$0xf]
        %v362 = vld [vmem:[%s2 + $0x8] sm:$0xf]
        %v363 = vld [vmem:[%s2 + $0xc] sm:$0xf]
        %v364 = vld [vmem:[%s2 + $0x10] sm:$0xf]
        %v365 = vld [vmem:[%s2 + $0x14] sm:$0xf]
        %v366 = vld [vmem:[%s3] sm:$0x1]
        %v367 = vrot.slane %v271, 7
        %v368 = vrot.slane %v272, 7
        %v369 = vrot.slane %v273, 7
        %v370 = vrot.slane %v274, 7
        %vm371 = vcmp.lt.s32.totalorder %v276, 1
        %v372 = vsel %vm371, %v369, %v370
        %v373 = vsel %vm371, %v368, %v369
        %v374 = vsel %vm371, %v367, %v368
        %v375 = vsel %vm371, %v370, %v367
        %v376 = vsel %vm328, 1, 0
        %v377 = vsel %vm329, 1, 0
        %v378 = vsel %vm330, 1, 0
        %v379 = vsel %vm331, 1, 0
        %vm380 = vcmp.eq.s32.totalorder %v376, 1
        %vm381 = vcmp.eq.s32.totalorder %v377, 1
        %vm382 = vcmp.eq.s32.totalorder %v378, 1
        %vm383 = vcmp.eq.s32.totalorder %v379, 1
        %v384 = vsel %vm380, %v375, 0.0
        %v385 = vsel %vm381, %v374, 0.0
        %v386 = vsel %vm382, %v373, 0.0
        %v387 = vsel %vm383, %v372, 0.0
        %v388 = vrot.slane %v271, 1
        %v389 = vrot.slane %v272, 1
        %v390 = vrot.slane %v273, 1
        %v391 = vrot.slane %v274, 1
        %vm392 = vcmp.lt.s32.totalorder %v276, 7
        %v393 = vsel %vm392, %v390, %v391
        %v394 = vsel %vm392, %v389, %v390
        %v395 = vsel %vm392, %v388, %v389
        %v396 = vsel %vm392, %v391, %v388
        %v397 = vsel %vm344, 1, 0
        %v398 = vsel %vm345, 1, 0
        %v399 = vsel %vm346, 1, 0
        %v400 = vsel %vm347, 1, 0
        %vm401 = vcmp.eq.s32.totalorder %v397, 1
        %vm402 = vcmp.eq.s32.totalorder %v398, 1
        %vm403 = vcmp.eq.s32.totalorder %v399, 1
        %vm404 = vcmp.eq.s32.totalorder %v400, 1
        %v405 = vsel %vm401, %v395, 0.0
        %v406 = vsel %vm402, %v394, 0.0
        %v407 = vsel %vm403, %v393, 0.0
        %v408 = vsel %vm404, %v396, 0.0
        %413 = vrot.lane.b32.xlu0 %v271, 16
        %v414 = vpop.permute.xlu0 %413
        %415 = vrot.lane.b32.xlu0 %v272, 16
        %v416 = vpop.permute.xlu0 %415
        %417 = vrot.lane.b32.xlu0 %v273, 16
        %v418 = vpop.permute.xlu0 %417
        %419 = vrot.lane.b32.xlu0 %v274, 16
        %v420 = vpop.permute.xlu0 %419
        %429 = vrot.lane.b32.xlu0 %v405, 32
        %v430 = vpop.permute.xlu0 %429
        %431 = vrot.lane.b32.xlu0 %v406, 32
        %v432 = vpop.permute.xlu0 %431
        %433 = vrot.lane.b32.xlu0 %v407, 32
        %v434 = vpop.permute.xlu0 %433
        %435 = vrot.lane.b32.xlu0 %v408, 32
        %v436 = vpop.permute.xlu0 %435
        %vm441 = vcmask 130048
        %v442 = vsel %vm441, %v384, %v414
        %v443 = vsel %vm441, %v385, %v416
        %v444 = vsel %vm441, %v386, %v418
        %v445 = vsel %vm441, %v387, %v420
        %vm446 = vcmask 261120
        %v447 = vsel %vm446, %v442, %v430
        %v448 = vsel %vm446, %v443, %v432
        %v449 = vsel %vm446, %v444, %v434
        %v450 = vsel %vm446, %v445, %v436
        %v451 = vpack.c.bf16 %v448, %v447
        %v452 = vpack.c.bf16 %v450, %v449
        %v454 = vlaneseq
        %v455 = vshrl.u32 %v454, 7
        %v456 = vsub.s32 0, %v455
        %v457 = vrot.slane %v366, %v456
        %v465 = vunpack.c.l.b16 %v360
        %v466 = vunpack.c.l.b16 %v361
        %v467 = vunpack.c.l.b16 %v362
        %v468 = vunpack.c.l.b16 %v363
        %v469 = vunpack.c.l.b16 %v364
        %v470 = vunpack.c.l.b16 %v365
        %v471 = vpack.c.b16 %v466, %v465
        %v472 = vpack.c.b16 %v468, %v467
        %v473 = vpack.c.b16 %v470, %v469
        %vm477 = vcmask 392192
        %v479 = vsel %vm477, %v451, 0
        %v482 = vsel %vm477, %v452, 0
        %484 = vmatprep.subr.bf16.mxu0 0
        %485 = vmatpush1.bf16.msra.mxu0 %v471
        %486 = vmatprep.subr.bf16.mxu0 0
        %487 = vmatpush1.bf16.msra.mxu0 %v472
        %488 = vmatprep.subr.bf16.mxu0 0
        %489 = vmatpush1.bf16.msra.mxu0 %v473
        %490 = vmatprep.subr.bf16.mxu0 0
        %491 = vmatpush1.bf16.msra.mxu0 0
        %492 = vmatprep.subr.bf16.mxu0 0
        %493 = vmatpush1.bf16.msra.mxu0 0
        %494 = vmatprep.subr.bf16.mxu0 0
        %495 = vmatpush1.bf16.msra.mxu0 0
        %496 = vmatprep.subr.bf16.mxu0 0
        %497 = vmatpush1.bf16.msra.mxu0 0
        %498 = vmatprep.subr.bf16.mxu0 0
        %499 = vmatpush1.bf16.msra.mxu0 0
        %500 = vmatprep.subr.bf16.mxu0 0
        %501 = vmatpush1.bf16.msra.mxu0 0
        %502 = vmatprep.subr.bf16.mxu0 0
        %503 = vmatpush1.bf16.msra.mxu0 0
        %504 = vmatprep.subr.bf16.mxu0 0
        %505 = vmatpush1.bf16.msra.mxu0 0
        %506 = vmatprep.subr.bf16.mxu0 0
        %507 = vmatpush1.bf16.msra.mxu0 0
        %508 = vmatprep.subr.bf16.mxu0 0
        %509 = vmatpush1.bf16.msra.mxu0 0
        %510 = vmatprep.subr.bf16.mxu0 0
        %511 = vmatpush1.bf16.msra.mxu0 0
        %512 = vmatprep.subr.bf16.mxu0 0
        %513 = vmatpush1.bf16.msra.mxu0 0
        %514 = vmatprep.subr.bf16.mxu0 0
        %515 = vmatpush1.bf16.msra.mxu0 0
        %516 = vmatprep.mubr.bf16.mxu0 0
        %517 = vmatmul.mubr.bf16.gmra.mrb[0].mxu0 %v479
        %v518 = vpop.f32.mrb[0].mxu0
        %v519 = vadd.f32 %v457, %v518
        %v520 = vpop.f32.mrb[0].mxu0
        %v521 = vpop.f32.mrb[0].mxu0
        %v522 = vadd.f32 %v457, %v521
        %v523 = vpop.f32.mrb[0].mxu0
        %524 = vmatprep.mubr.bf16.mxu0 0
        %525 = vmatmul.mubr.bf16.gmra.mrb[0].mxu0 %v482
        %v526 = vpop.f32.mrb[0].mxu0
        %v527 = vadd.f32 %v457, %v526
        %v528 = vpop.f32.mrb[0].mxu0
        %v529 = vpop.f32.mrb[0].mxu0
        %v530 = vadd.f32 %v457, %v529
        %v531 = vpop.f32.mrb[0].mxu0
        %532 = vdwg.mxu0
        %v533 = vmax.f32 %v519, 0.0
        %v534 = vmax.f32 %v522, 0.0
        %v535 = vmax.f32 %v527, 0.0
        %v536 = vmax.f32 %v530, 0.0
        %v537 = vld [vmem:[%s4] sm:$0xf]
        %v538 = vld [vmem:[%s4 + $0x4] sm:$0xf]
        %v539 = vld [vmem:[%s4 + $0x8] sm:$0xf]
        %v540 = vld [vmem:[%s4 + $0xc] sm:$0xf]
        %v541 = vld [vmem:[%s4 + $0x10] sm:$0xf]
        %v542 = vld [vmem:[%s4 + $0x14] sm:$0xf]
        %v543 = vld [vmem:[%s4 + $0x18] sm:$0xf]
        %v544 = vld [vmem:[%s4 + $0x1c] sm:$0xf]
        %v545 = vld [vmem:[%s4 + $0x20] sm:$0xf]
        %v546 = vld [vmem:[%s4 + $0x24] sm:$0xf]
        %v547 = vld [vmem:[%s4 + $0x28] sm:$0xf]
        %v548 = vld [vmem:[%s4 + $0x2c] sm:$0xf]
        %v549 = vld [vmem:[%s5] sm:$0x1]
        %v550 = vrot.slane %v533, 7
        %v551 = vrot.slane %v534, 7
        %v552 = vrot.slane %v535, 7
        %v553 = vrot.slane %v536, 7
        %v554 = vsel %vm371, %v552, %v553
        %v555 = vsel %vm371, %v551, %v552
        %v556 = vsel %vm371, %v550, %v551
        %v557 = vsel %vm371, %v553, %v550
        %v558 = vsel %vm380, %v557, 0.0
        %v559 = vsel %vm381, %v556, 0.0
        %v560 = vsel %vm382, %v555, 0.0
        %v561 = vsel %vm383, %v554, 0.0
        %v562 = vrot.slane %v533, 1
        %v563 = vrot.slane %v534, 1
        %v564 = vrot.slane %v535, 1
        %v565 = vrot.slane %v536, 1
        %v566 = vsel %vm392, %v564, %v565
        %v567 = vsel %vm392, %v563, %v564
        %v568 = vsel %vm392, %v562, %v563
        %v569 = vsel %vm392, %v565, %v562
        %v570 = vsel %vm401, %v568, 0.0
        %v571 = vsel %vm402, %v567, 0.0
        %v572 = vsel %vm403, %v566, 0.0
        %v573 = vsel %vm404, %v569, 0.0
        %578 = vrot.lane.b32.xlu0 %v533, 32
        %v579 = vpop.permute.xlu0 %578
        %580 = vrot.lane.b32.xlu0 %v534, 32
        %v581 = vpop.permute.xlu0 %580
        %582 = vrot.lane.b32.xlu0 %v535, 32
        %v583 = vpop.permute.xlu0 %582
        %584 = vrot.lane.b32.xlu0 %v536, 32
        %v585 = vpop.permute.xlu0 %584
        %594 = vrot.lane.b32.xlu0 %v570, 64
        %v595 = vpop.permute.xlu0 %594
        %596 = vrot.lane.b32.xlu0 %v571, 64
        %v597 = vpop.permute.xlu0 %596
        %598 = vrot.lane.b32.xlu0 %v572, 64
        %v599 = vpop.permute.xlu0 %598
        %600 = vrot.lane.b32.xlu0 %v573, 64
        %v601 = vpop.permute.xlu0 %600
        %v606 = vsel %vm446, %v558, %v579
        %v607 = vsel %vm446, %v559, %v581
        %v608 = vsel %vm446, %v560, %v583
        %v609 = vsel %vm446, %v561, %v585
        %vm610 = vcmask 523264
        %v611 = vsel %vm610, %v606, %v595
        %v612 = vsel %vm610, %v607, %v597
        %v613 = vsel %vm610, %v608, %v599
        %v614 = vsel %vm610, %v609, %v601
        %v615 = vpack.c.bf16 %v612, %v611
        %v616 = vpack.c.bf16 %v614, %v613
        %v618 = vlaneseq
        %v619 = vshrl.u32 %v618, 7
        %v620 = vsub.s32 0, %v619
        %v621 = vrot.slane %v549, %v620
        %v635 = vunpack.c.l.b16 %v537
        %v636 = vunpack.c.l.b16 %v538
        %v637 = vunpack.c.l.b16 %v539
        %v638 = vunpack.c.l.b16 %v540
        %v639 = vunpack.c.l.b16 %v541
        %v640 = vunpack.c.l.b16 %v542
        %v641 = vunpack.c.l.b16 %v543
        %v642 = vunpack.c.l.b16 %v544
        %v643 = vunpack.c.l.b16 %v545
        %v644 = vunpack.c.l.b16 %v546
        %v645 = vunpack.c.l.b16 %v547
        %v646 = vunpack.c.l.b16 %v548
        %v647 = vpack.c.b16 %v636, %v635
        %v648 = vpack.c.b16 %v638, %v637
        %v649 = vpack.c.b16 %v640, %v639
        %v650 = vpack.c.b16 %v642, %v641
        %v651 = vpack.c.b16 %v644, %v643
        %v652 = vpack.c.b16 %v646, %v645
        %vm659 = vcmask 785408
        %v661 = vsel %vm659, %v615, 0
        %v664 = vsel %vm659, %v616, 0
        %666 = vmatprep.subr.bf16.mxu0 0
        %667 = vmatpush1.bf16.msra.mxu0 %v647
        %668 = vmatprep.subr.bf16.mxu0 0
        %669 = vmatpush1.bf16.msra.mxu0 %v648
        %670 = vmatprep.subr.bf16.mxu0 0
        %671 = vmatpush1.bf16.msra.mxu0 %v649
        %672 = vmatprep.subr.bf16.mxu0 0
        %673 = vmatpush1.bf16.msra.mxu0 %v650
        %674 = vmatprep.subr.bf16.mxu0 0
        %675 = vmatpush1.bf16.msra.mxu0 %v651
        %676 = vmatprep.subr.bf16.mxu0 0
        %677 = vmatpush1.bf16.msra.mxu0 %v652
        %678 = vmatprep.subr.bf16.mxu0 0
        %679 = vmatpush1.bf16.msra.mxu0 0
        %680 = vmatprep.subr.bf16.mxu0 0
        %681 = vmatpush1.bf16.msra.mxu0 0
        %682 = vmatprep.subr.bf16.mxu0 0
        %683 = vmatpush1.bf16.msra.mxu0 0
        %684 = vmatprep.subr.bf16.mxu0 0
        %685 = vmatpush1.bf16.msra.mxu0 0
        %686 = vmatprep.subr.bf16.mxu0 0
        %687 = vmatpush1.bf16.msra.mxu0 0
        %688 = vmatprep.subr.bf16.mxu0 0
        %689 = vmatpush1.bf16.msra.mxu0 0
        %690 = vmatprep.subr.bf16.mxu0 0
        %691 = vmatpush1.bf16.msra.mxu0 0
        %692 = vmatprep.subr.bf16.mxu0 0
        %693 = vmatpush1.bf16.msra.mxu0 0
        %694 = vmatprep.subr.bf16.mxu0 0
        %695 = vmatpush1.bf16.msra.mxu0 0
        %696 = vmatprep.subr.bf16.mxu0 0
        %697 = vmatpush1.bf16.msra.mxu0 0
        %698 = vmatprep.mubr.bf16.mxu0 0
        %699 = vmatmul.mubr.bf16.gmra.mrb[0].mxu0 %v661
        %v700 = vpop.f32.mrb[0].mxu0
        %v701 = vadd.f32 %v621, %v700
        %v702 = vpop.f32.mrb[0].mxu0
        %v703 = vpop.f32.mrb[0].mxu0
        %v704 = vadd.f32 %v621, %v703
        %v705 = vpop.f32.mrb[0].mxu0
        %706 = vmatprep.mubr.bf16.mxu0 0
        %707 = vmatmul.mubr.bf16.gmra.mrb[0].mxu0 %v664
        %v708 = vpop.f32.mrb[0].mxu0
        %v709 = vadd.f32 %v621, %v708
        %v710 = vpop.f32.mrb[0].mxu0
        %v711 = vpop.f32.mrb[0].mxu0
        %v712 = vadd.f32 %v621, %v711
        %v713 = vpop.f32.mrb[0].mxu0
        %714 = vdwg.mxu0
        %v715 = vmax.f32 %v701, 0.0
        %v716 = vmax.f32 %v704, 0.0
        %v717 = vmax.f32 %v709, 0.0
        %v718 = vmax.f32 %v712, 0.0
        %v719 = vadd.f32 %v533, %v715
        %v720 = vadd.f32 %v534, %v716
        %v721 = vadd.f32 %v535, %v717
        %v722 = vadd.f32 %v536, %v718
        %s723 = scalar_lea.vmem %s4, 48
        %v724 = vld [vmem:[%s723] sm:$0xf]
        %v725 = vld [vmem:[%s723 + $0x4] sm:$0xf]
        %v726 = vld [vmem:[%s723 + $0x8] sm:$0xf]
        %v727 = vld [vmem:[%s723 + $0xc] sm:$0xf]
        %v728 = vld [vmem:[%s723 + $0x10] sm:$0xf]
        %v729 = vld [vmem:[%s723 + $0x14] sm:$0xf]
        %v730 = vld [vmem:[%s723 + $0x18] sm:$0xf]
        %v731 = vld [vmem:[%s723 + $0x1c] sm:$0xf]
        %v732 = vld [vmem:[%s723 + $0x20] sm:$0xf]
        %v733 = vld [vmem:[%s723 + $0x24] sm:$0xf]
        %v734 = vld [vmem:[%s723 + $0x28] sm:$0xf]
        %v735 = vld [vmem:[%s723 + $0x2c] sm:$0xf]
        %s736 = scalar_lea.vmem %s5, 1
        %v737 = vld [vmem:[%s736] sm:$0x1]
        %v738 = vrot.slane %v719, 6
        %v739 = vrot.slane %v720, 6
        %v740 = vrot.slane %v721, 6
        %v741 = vrot.slane %v722, 6
        %vm742 = vcmp.lt.s32.totalorder %v276, 2
        %v743 = vsel %vm742, %v740, %v741
        %v744 = vsel %vm742, %v739, %v740
        %v745 = vsel %vm742, %v738, %v739
        %v746 = vsel %vm742, %v741, %v738
        %v747 = vsel %vm332, 1, 0
        %v748 = vsel %vm333, 1, 0
        %v749 = vsel %vm334, 1, 0
        %v750 = vsel %vm335, 1, 0
        %vm751 = vcmp.eq.s32.totalorder %v747, 1
        %vm752 = vcmp.eq.s32.totalorder %v748, 1
        %vm753 = vcmp.eq.s32.totalorder %v749, 1
        %vm754 = vcmp.eq.s32.totalorder %v750, 1
        %v755 = vsel %vm751, %v746, 0.0
        %v756 = vsel %vm752, %v745, 0.0
        %v757 = vsel %vm753, %v744, 0.0
        %v758 = vsel %vm754, %v743, 0.0
        %v759 = vrot.slane %v719, 2
        %v760 = vrot.slane %v720, 2
        %v761 = vrot.slane %v721, 2
        %v762 = vrot.slane %v722, 2
        %vm763 = vcmp.lt.s32.totalorder %v276, 6
        %v764 = vsel %vm763, %v761, %v762
        %v765 = vsel %vm763, %v760, %v761
        %v766 = vsel %vm763, %v759, %v760
        %v767 = vsel %vm763, %v762, %v759
        %v768 = vsel %vm348, 1, 0
        %v769 = vsel %vm349, 1, 0
        %v770 = vsel %vm350, 1, 0
        %v771 = vsel %vm351, 1, 0
        %vm772 = vcmp.eq.s32.totalorder %v768, 1
        %vm773 = vcmp.eq.s32.totalorder %v769, 1
        %vm774 = vcmp.eq.s32.totalorder %v770, 1
        %vm775 = vcmp.eq.s32.totalorder %v771, 1
        %v776 = vsel %vm772, %v766, 0.0
        %v777 = vsel %vm773, %v765, 0.0
        %v778 = vsel %vm774, %v764, 0.0
        %v779 = vsel %vm775, %v767, 0.0
        %784 = vrot.lane.b32.xlu0 %v719, 32
        %v785 = vpop.permute.xlu0 %784
        %786 = vrot.lane.b32.xlu0 %v720, 32
        %v787 = vpop.permute.xlu0 %786
        %788 = vrot.lane.b32.xlu0 %v721, 32
        %v789 = vpop.permute.xlu0 %788
        %790 = vrot.lane.b32.xlu0 %v722, 32
        %v791 = vpop.permute.xlu0 %790
        %800 = vrot.lane.b32.xlu0 %v776, 64
        %v801 = vpop.permute.xlu0 %800
        %802 = vrot.lane.b32.xlu0 %v777, 64
        %v803 = vpop.permute.xlu0 %802
        %804 = vrot.lane.b32.xlu0 %v778, 64
        %v805 = vpop.permute.xlu0 %804
        %806 = vrot.lane.b32.xlu0 %v779, 64
        %v807 = vpop.permute.xlu0 %806
        %v812 = vsel %vm446, %v755, %v785
        %v813 = vsel %vm446, %v756, %v787
        %v814 = vsel %vm446, %v757, %v789
        %v815 = vsel %vm446, %v758, %v791
        %v816 = vsel %vm610, %v812, %v801
        %v817 = vsel %vm610, %v813, %v803
        %v818 = vsel %vm610, %v814, %v805
        %v819 = vsel %vm610, %v815, %v807
        %v820 = vpack.c.bf16 %v817, %v816
        %v821 = vpack.c.bf16 %v819, %v818
        %v823 = vlaneseq
        %v824 = vshrl.u32 %v823, 7
        %v825 = vsub.s32 0, %v824
        %v826 = vrot.slane %v737, %v825
        %v840 = vunpack.c.l.b16 %v724
        %v841 = vunpack.c.l.b16 %v725
        %v842 = vunpack.c.l.b16 %v726
        %v843 = vunpack.c.l.b16 %v727
        %v844 = vunpack.c.l.b16 %v728
        %v845 = vunpack.c.l.b16 %v729
        %v846 = vunpack.c.l.b16 %v730
        %v847 = vunpack.c.l.b16 %v731
        %v848 = vunpack.c.l.b16 %v732
        %v849 = vunpack.c.l.b16 %v733
        %v850 = vunpack.c.l.b16 %v734
        %v851 = vunpack.c.l.b16 %v735
        %v852 = vpack.c.b16 %v841, %v840
        %v853 = vpack.c.b16 %v843, %v842
        %v854 = vpack.c.b16 %v845, %v844
        %v855 = vpack.c.b16 %v847, %v846
        %v856 = vpack.c.b16 %v849, %v848
        %v857 = vpack.c.b16 %v851, %v850
        %v865 = vsel %vm659, %v820, 0
        %v868 = vsel %vm659, %v821, 0
        %870 = vmatprep.subr.bf16.mxu0 0
        %871 = vmatpush1.bf16.msra.mxu0 %v852
        %872 = vmatprep.subr.bf16.mxu0 0
        %873 = vmatpush1.bf16.msra.mxu0 %v853
        %874 = vmatprep.subr.bf16.mxu0 0
        %875 = vmatpush1.bf16.msra.mxu0 %v854
        %876 = vmatprep.subr.bf16.mxu0 0
        %877 = vmatpush1.bf16.msra.mxu0 %v855
        %878 = vmatprep.subr.bf16.mxu0 0
        %879 = vmatpush1.bf16.msra.mxu0 %v856
        %880 = vmatprep.subr.bf16.mxu0 0
        %881 = vmatpush1.bf16.msra.mxu0 %v857
        %882 = vmatprep.subr.bf16.mxu0 0
        %883 = vmatpush1.bf16.msra.mxu0 0
        %884 = vmatprep.subr.bf16.mxu0 0
        %885 = vmatpush1.bf16.msra.mxu0 0
        %886 = vmatprep.subr.bf16.mxu0 0
        %887 = vmatpush1.bf16.msra.mxu0 0
        %888 = vmatprep.subr.bf16.mxu0 0
        %889 = vmatpush1.bf16.msra.mxu0 0
        %890 = vmatprep.subr.bf16.mxu0 0
        %891 = vmatpush1.bf16.msra.mxu0 0
        %892 = vmatprep.subr.bf16.mxu0 0
        %893 = vmatpush1.bf16.msra.mxu0 0
        %894 = vmatprep.subr.bf16.mxu0 0
        %895 = vmatpush1.bf16.msra.mxu0 0
        %896 = vmatprep.subr.bf16.mxu0 0
        %897 = vmatpush1.bf16.msra.mxu0 0
        %898 = vmatprep.subr.bf16.mxu0 0
        %899 = vmatpush1.bf16.msra.mxu0 0
        %900 = vmatprep.subr.bf16.mxu0 0
        %901 = vmatpush1.bf16.msra.mxu0 0
        %902 = vmatprep.mubr.bf16.mxu0 0
        %903 = vmatmul.mubr.bf16.gmra.mrb[0].mxu0 %v865
        %v904 = vpop.f32.mrb[0].mxu0
        %v905 = vadd.f32 %v826, %v904
        %v906 = vpop.f32.mrb[0].mxu0
        %v907 = vpop.f32.mrb[0].mxu0
        %v908 = vadd.f32 %v826, %v907
        %v909 = vpop.f32.mrb[0].mxu0
        %910 = vmatprep.mubr.bf16.mxu0 0
        %911 = vmatmul.mubr.bf16.gmra.mrb[0].mxu0 %v868
        %v912 = vpop.f32.mrb[0].mxu0
        %v913 = vadd.f32 %v826, %v912
        %v914 = vpop.f32.mrb[0].mxu0
        %v915 = vpop.f32.mrb[0].mxu0
        %v916 = vadd.f32 %v826, %v915
        %v917 = vpop.f32.mrb[0].mxu0
        %918 = vdwg.mxu0
        %v919 = vmax.f32 %v905, 0.0
        %v920 = vmax.f32 %v908, 0.0
        %v921 = vmax.f32 %v913, 0.0
        %v922 = vmax.f32 %v916, 0.0
        %v923 = vadd.f32 %v719, %v919
        %v924 = vadd.f32 %v720, %v920
        %v925 = vadd.f32 %v721, %v921
        %v926 = vadd.f32 %v722, %v922
        %s927 = scalar_lea.vmem %s4, 96
        %v928 = vld [vmem:[%s927] sm:$0xf]
        %v929 = vld [vmem:[%s927 + $0x4] sm:$0xf]
        %v930 = vld [vmem:[%s927 + $0x8] sm:$0xf]
        %v931 = vld [vmem:[%s927 + $0xc] sm:$0xf]
        %v932 = vld [vmem:[%s927 + $0x10] sm:$0xf]
        %v933 = vld [vmem:[%s927 + $0x14] sm:$0xf]
        %v934 = vld [vmem:[%s927 + $0x18] sm:$0xf]
        %v935 = vld [vmem:[%s927 + $0x1c] sm:$0xf]
        %v936 = vld [vmem:[%s927 + $0x20] sm:$0xf]
        %v937 = vld [vmem:[%s927 + $0x24] sm:$0xf]
        %v938 = vld [vmem:[%s927 + $0x28] sm:$0xf]
        %v939 = vld [vmem:[%s927 + $0x2c] sm:$0xf]
        %s940 = scalar_lea.vmem %s5, 2
        %v941 = vld [vmem:[%s940] sm:$0x1]
        %v942 = vrot.slane %v923, 4
        %v943 = vrot.slane %v924, 4
        %v944 = vrot.slane %v925, 4
        %v945 = vrot.slane %v926, 4
        %vm946 = vcmp.lt.s32.totalorder %v276, 4
        %v947 = vsel %vm946, %v944, %v945
        %v948 = vsel %vm946, %v943, %v944
        %v949 = vsel %vm946, %v942, %v943
        %v950 = vsel %vm946, %v945, %v942
        %v951 = vsel %vm336, 1, 0
        %v952 = vsel %vm337, 1, 0
        %v953 = vsel %vm338, 1, 0
        %v954 = vsel %vm339, 1, 0
        %vm955 = vcmp.eq.s32.totalorder %v951, 1
        %vm956 = vcmp.eq.s32.totalorder %v952, 1
        %vm957 = vcmp.eq.s32.totalorder %v953, 1
        %vm958 = vcmp.eq.s32.totalorder %v954, 1
        %v959 = vsel %vm955, %v950, 0.0
        %v960 = vsel %vm956, %v949, 0.0
        %v961 = vsel %vm957, %v948, 0.0
        %v962 = vsel %vm958, %v947, 0.0
        %v963 = vsel %vm352, 1, 0
        %v964 = vsel %vm353, 1, 0
        %v965 = vsel %vm354, 1, 0
        %v966 = vsel %vm355, 1, 0
        %vm967 = vcmp.eq.s32.totalorder %v963, 1
        %vm968 = vcmp.eq.s32.totalorder %v964, 1
        %vm969 = vcmp.eq.s32.totalorder %v965, 1
        %vm970 = vcmp.eq.s32.totalorder %v966, 1
        %v971 = vsel %vm967, %v949, 0.0
        %v972 = vsel %vm968, %v948, 0.0
        %v973 = vsel %vm969, %v947, 0.0
        %v974 = vsel %vm970, %v950, 0.0
        %979 = vrot.lane.b32.xlu0 %v923, 32
        %v980 = vpop.permute.xlu0 %979
        %981 = vrot.lane.b32.xlu0 %v924, 32
        %v982 = vpop.permute.xlu0 %981
        %983 = vrot.lane.b32.xlu0 %v925, 32
        %v984 = vpop.permute.xlu0 %983
        %985 = vrot.lane.b32.xlu0 %v926, 32
        %v986 = vpop.permute.xlu0 %985
        %995 = vrot.lane.b32.xlu0 %v971, 64
        %v996 = vpop.permute.xlu0 %995
        %997 = vrot.lane.b32.xlu0 %v972, 64
        %v998 = vpop.permute.xlu0 %997
        %999 = vrot.lane.b32.xlu0 %v973, 64
        %v1000 = vpop.permute.xlu0 %999
        %1001 = vrot.lane.b32.xlu0 %v974, 64
        %v1002 = vpop.permute.xlu0 %1001
        %v1007 = vsel %vm446, %v959, %v980
        %v1008 = vsel %vm446, %v960, %v982
        %v1009 = vsel %vm446, %v961, %v984
        %v1010 = vsel %vm446, %v962, %v986
        %v1011 = vsel %vm610, %v1007, %v996
        %v1012 = vsel %vm610, %v1008, %v998
        %v1013 = vsel %vm610, %v1009, %v1000
        %v1014 = vsel %vm610, %v1010, %v1002
        %v1015 = vpack.c.bf16 %v1012, %v1011
        %v1016 = vpack.c.bf16 %v1014, %v1013
        %v1018 = vlaneseq
        %v1019 = vshrl.u32 %v1018, 7
        %v1020 = vsub.s32 0, %v1019
        %v1021 = vrot.slane %v941, %v1020
        %v1035 = vunpack.c.l.b16 %v928
        %v1036 = vunpack.c.l.b16 %v929
        %v1037 = vunpack.c.l.b16 %v930
        %v1038 = vunpack.c.l.b16 %v931
        %v1039 = vunpack.c.l.b16 %v932
        %v1040 = vunpack.c.l.b16 %v933
        %v1041 = vunpack.c.l.b16 %v934
        %v1042 = vunpack.c.l.b16 %v935
        %v1043 = vunpack.c.l.b16 %v936
        %v1044 = vunpack.c.l.b16 %v937
        %v1045 = vunpack.c.l.b16 %v938
        %v1046 = vunpack.c.l.b16 %v939
        %v1047 = vpack.c.b16 %v1036, %v1035
        %v1048 = vpack.c.b16 %v1038, %v1037
        %v1049 = vpack.c.b16 %v1040, %v1039
        %v1050 = vpack.c.b16 %v1042, %v1041
        %v1051 = vpack.c.b16 %v1044, %v1043
        %v1052 = vpack.c.b16 %v1046, %v1045
        %v1060 = vsel %vm659, %v1015, 0
        %v1063 = vsel %vm659, %v1016, 0
        %1065 = vmatprep.subr.bf16.mxu0 0
        %1066 = vmatpush1.bf16.msra.mxu0 %v1047
        %1067 = vmatprep.subr.bf16.mxu0 0
        %1068 = vmatpush1.bf16.msra.mxu0 %v1048
        %1069 = vmatprep.subr.bf16.mxu0 0
        %1070 = vmatpush1.bf16.msra.mxu0 %v1049
        %1071 = vmatprep.subr.bf16.mxu0 0
        %1072 = vmatpush1.bf16.msra.mxu0 %v1050
        %1073 = vmatprep.subr.bf16.mxu0 0
        %1074 = vmatpush1.bf16.msra.mxu0 %v1051
        %1075 = vmatprep.subr.bf16.mxu0 0
        %1076 = vmatpush1.bf16.msra.mxu0 %v1052
        %1077 = vmatprep.subr.bf16.mxu0 0
        %1078 = vmatpush1.bf16.msra.mxu0 0
        %1079 = vmatprep.subr.bf16.mxu0 0
        %1080 = vmatpush1.bf16.msra.mxu0 0
        %1081 = vmatprep.subr.bf16.mxu0 0
        %1082 = vmatpush1.bf16.msra.mxu0 0
        %1083 = vmatprep.subr.bf16.mxu0 0
        %1084 = vmatpush1.bf16.msra.mxu0 0
        %1085 = vmatprep.subr.bf16.mxu0 0
        %1086 = vmatpush1.bf16.msra.mxu0 0
        %1087 = vmatprep.subr.bf16.mxu0 0
        %1088 = vmatpush1.bf16.msra.mxu0 0
        %1089 = vmatprep.subr.bf16.mxu0 0
        %1090 = vmatpush1.bf16.msra.mxu0 0
        %1091 = vmatprep.subr.bf16.mxu0 0
        %1092 = vmatpush1.bf16.msra.mxu0 0
        %1093 = vmatprep.subr.bf16.mxu0 0
        %1094 = vmatpush1.bf16.msra.mxu0 0
        %1095 = vmatprep.subr.bf16.mxu0 0
        %1096 = vmatpush1.bf16.msra.mxu0 0
        %1097 = vmatprep.mubr.bf16.mxu0 0
        %1098 = vmatmul.mubr.bf16.gmra.mrb[0].mxu0 %v1060
        %v1099 = vpop.f32.mrb[0].mxu0
        %v1100 = vadd.f32 %v1021, %v1099
        %v1101 = vpop.f32.mrb[0].mxu0
        %v1102 = vpop.f32.mrb[0].mxu0
        %v1103 = vadd.f32 %v1021, %v1102
        %v1104 = vpop.f32.mrb[0].mxu0
        %1105 = vmatprep.mubr.bf16.mxu0 0
        %1106 = vmatmul.mubr.bf16.gmra.mrb[0].mxu0 %v1063
        %v1107 = vpop.f32.mrb[0].mxu0
        %v1108 = vadd.f32 %v1021, %v1107
        %v1109 = vpop.f32.mrb[0].mxu0
        %v1110 = vpop.f32.mrb[0].mxu0
        %v1111 = vadd.f32 %v1021, %v1110
        %v1112 = vpop.f32.mrb[0].mxu0
        %1113 = vdwg.mxu0
        %v1114 = vmax.f32 %v1100, 0.0
        %v1115 = vmax.f32 %v1103, 0.0
        %v1116 = vmax.f32 %v1108, 0.0
        %v1117 = vmax.f32 %v1111, 0.0
        %v1118 = vadd.f32 %v923, %v1114
        %v1119 = vadd.f32 %v924, %v1115
        %v1120 = vadd.f32 %v925, %v1116
        %v1121 = vadd.f32 %v926, %v1117
        %s1122 = scalar_lea.vmem %s4, 144
        %v1123 = vld [vmem:[%s1122] sm:$0xf]
        %v1124 = vld [vmem:[%s1122 + $0x4] sm:$0xf]
        %v1125 = vld [vmem:[%s1122 + $0x8] sm:$0xf]
        %v1126 = vld [vmem:[%s1122 + $0xc] sm:$0xf]
        %v1127 = vld [vmem:[%s1122 + $0x10] sm:$0xf]
        %v1128 = vld [vmem:[%s1122 + $0x14] sm:$0xf]
        %v1129 = vld [vmem:[%s1122 + $0x18] sm:$0xf]
        %v1130 = vld [vmem:[%s1122 + $0x1c] sm:$0xf]
        %v1131 = vld [vmem:[%s1122 + $0x20] sm:$0xf]
        %v1132 = vld [vmem:[%s1122 + $0x24] sm:$0xf]
        %v1133 = vld [vmem:[%s1122 + $0x28] sm:$0xf]
        %v1134 = vld [vmem:[%s1122 + $0x2c] sm:$0xf]
        %s1135 = scalar_lea.vmem %s5, 3
        %v1136 = vld [vmem:[%s1135] sm:$0x1]
        %v1137 = vsel %vm340, 1, 0
        %v1138 = vsel %vm341, 1, 0
        %v1139 = vsel %vm342, 1, 0
        %v1140 = vsel %vm343, 1, 0
        %vm1141 = vcmp.eq.s32.totalorder %v1137, 1
        %vm1142 = vcmp.eq.s32.totalorder %v1138, 1
        %vm1143 = vcmp.eq.s32.totalorder %v1139, 1
        %vm1144 = vcmp.eq.s32.totalorder %v1140, 1
        %v1145 = vsel %vm1141, %v1121, 0.0
        %v1146 = vsel %vm1142, %v1118, 0.0
        %v1147 = vsel %vm1143, %v1119, 0.0
        %v1148 = vsel %vm1144, %v1120, 0.0
        %v1149 = vsel %vm356, 1, 0
        %v1150 = vsel %vm357, 1, 0
        %v1151 = vsel %vm358, 1, 0
        %v1152 = vsel %vm359, 1, 0
        %vm1153 = vcmp.eq.s32.totalorder %v1149, 1
        %vm1154 = vcmp.eq.s32.totalorder %v1150, 1
        %vm1155 = vcmp.eq.s32.totalorder %v1151, 1
        %vm1156 = vcmp.eq.s32.totalorder %v1152, 1
        %v1157 = vsel %vm1153, %v1119, 0.0
        %v1158 = vsel %vm1154, %v1120, 0.0
        %v1159 = vsel %vm1155, %v1121, 0.0
        %v1160 = vsel %vm1156, %v1118, 0.0
        %1165 = vrot.lane.b32.xlu0 %v1118, 32
        %v1166 = vpop.permute.xlu0 %1165
        %1167 = vrot.lane.b32.xlu0 %v1119, 32
        %v1168 = vpop.permute.xlu0 %1167
        %1169 = vrot.lane.b32.xlu0 %v1120, 32
        %v1170 = vpop.permute.xlu0 %1169
        %1171 = vrot.lane.b32.xlu0 %v1121, 32
        %v1172 = vpop.permute.xlu0 %1171
        %1181 = vrot.lane.b32.xlu0 %v1157, 64
        %v1182 = vpop.permute.xlu0 %1181
        %1183 = vrot.lane.b32.xlu0 %v1158, 64
        %v1184 = vpop.permute.xlu0 %1183
        %1185 = vrot.lane.b32.xlu0 %v1159, 64
        %v1186 = vpop.permute.xlu0 %1185
        %1187 = vrot.lane.b32.xlu0 %v1160, 64
        %v1188 = vpop.permute.xlu0 %1187
        %v1193 = vsel %vm446, %v1145, %v1166
        %v1194 = vsel %vm446, %v1146, %v1168
        %v1195 = vsel %vm446, %v1147, %v1170
        %v1196 = vsel %vm446, %v1148, %v1172
        %v1197 = vsel %vm610, %v1193, %v1182
        %v1198 = vsel %vm610, %v1194, %v1184
        %v1199 = vsel %vm610, %v1195, %v1186
        %v1200 = vsel %vm610, %v1196, %v1188
        %v1201 = vpack.c.bf16 %v1198, %v1197
        %v1202 = vpack.c.bf16 %v1200, %v1199
        %v1204 = vlaneseq
        %v1205 = vshrl.u32 %v1204, 7
        %v1206 = vsub.s32 0, %v1205
        %v1207 = vrot.slane %v1136, %v1206
        %v1221 = vunpack.c.l.b16 %v1123
        %v1222 = vunpack.c.l.b16 %v1124
        %v1223 = vunpack.c.l.b16 %v1125
        %v1224 = vunpack.c.l.b16 %v1126
        %v1225 = vunpack.c.l.b16 %v1127
        %v1226 = vunpack.c.l.b16 %v1128
        %v1227 = vunpack.c.l.b16 %v1129
        %v1228 = vunpack.c.l.b16 %v1130
        %v1229 = vunpack.c.l.b16 %v1131
        %v1230 = vunpack.c.l.b16 %v1132
        %v1231 = vunpack.c.l.b16 %v1133
        %v1232 = vunpack.c.l.b16 %v1134
        %v1233 = vpack.c.b16 %v1222, %v1221
        %v1234 = vpack.c.b16 %v1224, %v1223
        %v1235 = vpack.c.b16 %v1226, %v1225
        %v1236 = vpack.c.b16 %v1228, %v1227
        %v1237 = vpack.c.b16 %v1230, %v1229
        %v1238 = vpack.c.b16 %v1232, %v1231
        %v1246 = vsel %vm659, %v1201, 0
        %v1249 = vsel %vm659, %v1202, 0
        %1251 = vmatprep.subr.bf16.mxu0 0
        %1252 = vmatpush1.bf16.msra.mxu0 %v1233
        %1253 = vmatprep.subr.bf16.mxu0 0
        %1254 = vmatpush1.bf16.msra.mxu0 %v1234
        %1255 = vmatprep.subr.bf16.mxu0 0
        %1256 = vmatpush1.bf16.msra.mxu0 %v1235
        %1257 = vmatprep.subr.bf16.mxu0 0
        %1258 = vmatpush1.bf16.msra.mxu0 %v1236
        %1259 = vmatprep.subr.bf16.mxu0 0
        %1260 = vmatpush1.bf16.msra.mxu0 %v1237
        %1261 = vmatprep.subr.bf16.mxu0 0
        %1262 = vmatpush1.bf16.msra.mxu0 %v1238
        %1263 = vmatprep.subr.bf16.mxu0 0
        %1264 = vmatpush1.bf16.msra.mxu0 0
        %1265 = vmatprep.subr.bf16.mxu0 0
        %1266 = vmatpush1.bf16.msra.mxu0 0
        %1267 = vmatprep.subr.bf16.mxu0 0
        %1268 = vmatpush1.bf16.msra.mxu0 0
        %1269 = vmatprep.subr.bf16.mxu0 0
        %1270 = vmatpush1.bf16.msra.mxu0 0
        %1271 = vmatprep.subr.bf16.mxu0 0
        %1272 = vmatpush1.bf16.msra.mxu0 0
        %1273 = vmatprep.subr.bf16.mxu0 0
        %1274 = vmatpush1.bf16.msra.mxu0 0
        %1275 = vmatprep.subr.bf16.mxu0 0
        %1276 = vmatpush1.bf16.msra.mxu0 0
        %1277 = vmatprep.subr.bf16.mxu0 0
        %1278 = vmatpush1.bf16.msra.mxu0 0
        %1279 = vmatprep.subr.bf16.mxu0 0
        %1280 = vmatpush1.bf16.msra.mxu0 0
        %1281 = vmatprep.subr.bf16.mxu0 0
        %1282 = vmatpush1.bf16.msra.mxu0 0
        %1283 = vmatprep.mubr.bf16.mxu0 0
        %1284 = vmatmul.mubr.bf16.gmra.mrb[0].mxu0 %v1246
        %v1285 = vpop.f32.mrb[0].mxu0
        %v1286 = vadd.f32 %v1207, %v1285
        %v1287 = vpop.f32.mrb[0].mxu0
        %v1288 = vpop.f32.mrb[0].mxu0
        %v1289 = vadd.f32 %v1207, %v1288
        %v1290 = vpop.f32.mrb[0].mxu0
        %1291 = vmatprep.mubr.bf16.mxu0 0
        %1292 = vmatmul.mubr.bf16.gmra.mrb[0].mxu0 %v1249
        %v1293 = vpop.f32.mrb[0].mxu0
        %v1294 = vadd.f32 %v1207, %v1293
        %v1295 = vpop.f32.mrb[0].mxu0
        %v1296 = vpop.f32.mrb[0].mxu0
        %v1297 = vadd.f32 %v1207, %v1296
        %v1298 = vpop.f32.mrb[0].mxu0
        %1299 = vdwg.mxu0
        %v1300 = vmax.f32 %v1286, 0.0
        %v1301 = vmax.f32 %v1289, 0.0
        %v1302 = vmax.f32 %v1294, 0.0
        %v1303 = vmax.f32 %v1297, 0.0
        %v1304 = vadd.f32 %v1118, %v1300
        %v1305 = vadd.f32 %v1119, %v1301
        %v1306 = vadd.f32 %v1120, %v1302
        %v1307 = vadd.f32 %v1121, %v1303
        %1308 = vst.msk [vmem:[%s245] sm:$0xff] %vm446, %v1304
        %1309 = vst.msk [vmem:[%s245 + $0x8] sm:$0xff] %vm446, %v1305
        %1310 = vst.msk [vmem:[%s245 + $0x10] sm:$0xff] %vm446, %v1306
        %1311 = vst.msk [vmem:[%s245 + $0x18] sm:$0xff] %vm446, %v1307
        %s1312 = sand.u32 %s159, 1
        %s1313 = scalar_lea.sflag [#allocation3], %s1312
        %s1314 = sand.u32 %s159, 1
        %s1315 = smul.addr %s1314, 32
        %s1316 = scalar_lea.vmem [#allocation2], %s1315
        // Predicated region
        $region45: #{channel_invariant_feature_extractor.1} parent=43 // pred_check
          %p1317 = pneg %p169
        $region46: #{channel_invariant_feature_extractor.1} parent=43 // pred_check_branch
          %1319 = sbr.rel (%p1317) target = $region48
        $region47: #{channel_invariant_feature_extractor.1} parent=43 // pred_region
          %s1320 = smul.u32 4, %s20
          %s1322 = ssub.s32 512, 512
          %1323 = vsyncadd %s1313, %s1322
          %s1324 = smul.addr %s1320, 128
          %s1325 = scalar_lea.hbm %s6, %s1324
          %s1326 = sshll.u32 %s1316, 4
          %s1327 = int_to_ptr.vmem [resolvable:$true] %s1326
          %1332 = dma.vmem_to_hbm [thread:$0]  %s1327, 512, %s1325, %s1313, 128, 128, 8
        $region48: #{channel_invariant_feature_extractor.1} parent=43 // pred_fallthru
          _
      $region44: #{channel_invariant_feature_extractor.1} parent=5 // pred_fallthru
        _
      %p1333 = scmp.le.s32.totalorder 2, %s15
      // Predicated region
      $region49: #{channel_invariant_feature_extractor.1} parent=5 // pred_check
        %p1334 = pneg %p1333
      $region50: #{channel_invariant_feature_extractor.1} parent=5 // pred_check_branch
        %1336 = sbr.rel (%p1334) target = $region52
      $region51: #{channel_invariant_feature_extractor.1} parent=5 // pred_region
        %s1337 = ssub.s32 %s15, 2
        // Predicated region
        $region53: #{channel_invariant_feature_extractor.1} parent=51 // pred_check
          %p1338 = pneg %p175
        $region54: #{channel_invariant_feature_extractor.1} parent=51 // pred_check_branch
          %1340 = sbr.rel (%p1338) target = $region56
        $region55: #{channel_invariant_feature_extractor.1} parent=51 // pred_region
          %s1341 = sand.u32 %s160, 1
          %s1342 = scalar_lea.sflag [#allocation3], %s1341
          %s1343 = sand.u32 %s160, 1
          %s1344 = smul.addr %s1343, 32
          %s1345 = scalar_lea.vmem [#allocation2], %s1344
          %1346 = dma.done %s1342, 512
        $region56: #{channel_invariant_feature_extractor.1} parent=51 // pred_fallthru
          _
      $region52: #{channel_invariant_feature_extractor.1} parent=5 // pred_fallthru
        _
    $region6: #{channel_invariant_feature_extractor.1} parent=1 // loop_footer
      %s19 = sadd.s32 1, %s15
    $region7: #{channel_invariant_feature_extractor.1} parent=1 // loop_footer_branch
      %14 = sbr.rel target = $region3
    $region8: #{channel_invariant_feature_extractor.1} parent=1 // loop_exit
      _
    %1347 = vsyncpa [#allocation3], 1
    %s1348 = scalar_lea.sflag [#allocation3], 1
    %1349 = vsyncpa %s1348, 1

</llo_original>
